<compile_context>
chip_gen: v7x
topology: tpu7x:2x2x1
jax: 0.10.0
libtpu: 0.0.40
codegen_flags: <defaults>
</compile_context>

<pallas_src>
import math

import jax
import jax.numpy as jnp
from jax.experimental import pallas as pl
from jax.experimental.pallas import tpu as pltpu

K = 3          # sample='none-3' -> 3x3, stride 1, padding 1
PAD = 1
BN_EPS = 1e-5


def _vmem_limit(block_bytes):
    # Explicit scoped-VMEM request sized from the real per-step footprint
    # (defaults are 16 MiB on v5e, 32 MiB on v6e/v7x — far below physical).
    return int(min(max(4 * block_bytes, 32 << 20), 48 << 20))


def pcb_activ_forward(x_nchw, mask_nchw, weight_oihw):
    """PCBActiv(in_ch, out_ch, bn=True, sample='none-3', activ='relu', conv_bias=False).

    x_nchw, mask_nchw : (N, Cin, H, W) float32
    weight_oihw       : (Cout, Cin, K, K) float32
    returns (h, new_mask), both (N, Cout, H, W).
    """
    N, Cin, H, W = x_nchw.shape
    Cout = weight_oihw.shape[0]
    Hp, Wp = H + 2 * PAD, W + 2 * PAD
    Lc = H * Wp                      # row-major output length incl. 2 junk cols/row
    Pext = Hp * Wp + (K - 1)         # padded flat length (+2 so every shift fits)
    KK = K * K
    CTR = 2 * KK * Cin               # packed contraction: (x*m) taps + m taps

    # Fold several batch samples into one grid step (amortize per-step overhead).
    BS = 1
    for d in range(1, min(N, 8) + 1):
        if N % d == 0:
            BS = d

    # ---- glue: zero-pad spatially, flatten channel-major, bf16 for the MXU path
    def prep(a):
        a = a.astype(jnp.float32)
        a = jnp.pad(a, ((0, 0), (0, 0), (PAD, PAD), (PAD, PAD)))
        a = a.reshape(N, Cin, Hp * Wp)
        a = jnp.pad(a, ((0, 0), (0, 0), (0, K - 1)))
        return a.astype(jnp.bfloat16)

    xpf = prep(x_nchw)               # (N, Cin, Pext) bf16
    mpf = prep(mask_nchw)            # (N, Cin, Pext) bf16 (binary -> exact)

    # Packed lhs: rows 0..Cout-1 = conv weights laid out over (tap, ci); the
    # last row is all-ones over the m-tap columns -> mask_conv in the same dot.
    w_x = jnp.transpose(weight_oihw.astype(jnp.float32), (0, 2, 3, 1))
    w_x = w_x.reshape(Cout, KK * Cin)            # [o, (ky*K+kx)*Cin + ci]
    lhs = jnp.zeros((Cout + 1, CTR), jnp.float32)
    lhs = lhs.at[:Cout, :KK * Cin].set(w_x)
    lhs = lhs.at[Cout, KK * Cin:].set(1.0)
    lhs = lhs.astype(jnp.bfloat16)

    # Valid-column mask over the (H, Wp) row-major output axis (cols >= W are
    # junk from horizontal padding).  Tiny host-built input (avoids in-kernel
    # integer mod); folded into `keep`, so no extra (Cout, Lc) multiply.
    col = jnp.arange(Lc, dtype=jnp.int32) % Wp
    valid = (col < W).astype(jnp.float32).reshape(1, Lc)

    # ------------------------------------------------------------------ kernel 1
    def pconv_kernel(x_ref, m_ref, w_ref, v_ref,
                     h_ref, nm_ref, sum_ref, sq_ref, rhs_ref):
        v = v_ref[...]                                   # (1, Lc) f32
        base = KK * Cin
        for b in range(BS):                              # unrolled, BS small
            x = x_ref[b]                                 # (Cin, Pext) bf16
            m = m_ref[b]                                 # (Cin, Pext) bf16
            xm = x * m                                   # 0/1 mask -> exact
            # im2col: tap (ky,kx) is a static lane offset s = ky*Wp + kx; each
            # shifted view is written exactly once into the packed rhs scratch.
            for t in range(KK):
                ky, kx = divmod(t, K)
                s = ky * Wp + kx
                rhs_ref[t * Cin:(t + 1) * Cin, :] = xm[:, s:s + Lc]
                rhs_ref[base + t * Cin:base + (t + 1) * Cin, :] = m[:, s:s + Lc]
            # Single MXU contraction: conv rows + mask-sum row.
            res = jnp.dot(w_ref[...], rhs_ref[...],
                          preferred_element_type=jnp.float32)   # (Cout+1, Lc)
            conv = res[:Cout]                            # (Cout, Lc) f32
            msum = res[Cout:Cout + 1]                    # (1, Lc), exact ints
            holes = msum == 0.0
            inv = 1.0 / jnp.where(holes, 1.0, msum)
            keep = jnp.logical_and(jnp.logical_not(holes), v > 0.5)
            out = jnp.where(keep, conv * inv, 0.0)       # holes & junk cols -> 0
            h_ref[b] = out.astype(h_ref.dtype)           # bf16, lane-dense store
            nm_ref[b] = keep.astype(nm_ref.dtype)        # single-channel mask
            # Per-sample BN statistics (f32); hole/junk columns contribute 0.
            sum_ref[b] = jnp.sum(out, axis=1, keepdims=True)        # (Cout, 1)
            sq_ref[b] = jnp.sum(out * out, axis=1, keepdims=True)   # (Cout, 1)

    blk1_bytes = (2 * (2 * BS * Cin * Pext * 2)                    # x + m blocks
                  + 2 * ((Cout + 1) * CTR * 2 + Lc * 4)            # lhs + valid
                  + 2 * (BS * Cout * Lc * 2 + BS * Lc * 4
                         + 2 * BS * Cout * 4)                      # outputs
                  + CTR * Lc * 2)                                  # rhs scratch

    h_raw, nm_flat, csum, csq = pl.pallas_call(
        pconv_kernel,
        grid=(N // BS,),
        in_specs=[
            pl.BlockSpec((BS, Cin, Pext), lambda n: (n, 0, 0)),
            pl.BlockSpec((BS, Cin, Pext), lambda n: (n, 0, 0)),
            pl.BlockSpec((Cout + 1, CTR), lambda n: (0, 0)),
            pl.BlockSpec((1, Lc), lambda n: (0, 0)),
        ],
        out_specs=[
            pl.BlockSpec((BS, Cout, Lc), lambda n: (n, 0, 0)),
            pl.BlockSpec((BS, 1, Lc), lambda n: (n, 0, 0)),
            pl.BlockSpec((BS, Cout, 1), lambda n: (n, 0, 0)),
            pl.BlockSpec((BS, Cout, 1), lambda n: (n, 0, 0)),
        ],
        out_shape=[
            jax.ShapeDtypeStruct((N, Cout, Lc), jnp.bfloat16),
            jax.ShapeDtypeStruct((N, 1, Lc), jnp.float32),
            jax.ShapeDtypeStruct((N, Cout, 1), jnp.float32),
            jax.ShapeDtypeStruct((N, Cout, 1), jnp.float32),
        ],
        scratch_shapes=[pltpu.VMEM((CTR, Lc), jnp.bfloat16)],
        compiler_params=pltpu.CompilerParams(
            dimension_semantics=("parallel",),
            vmem_limit_bytes=_vmem_limit(blk1_bytes)),
    )(xpf, mpf, lhs, valid)

    # BatchNorm2d batch statistics (gamma=1, beta=0, biased variance), f32.
    count = float(N * H * W)
    mean = jnp.sum(csum, axis=(0, 2)) / count
    var = jnp.maximum(jnp.sum(csq, axis=(0, 2)) / count - mean * mean, 0.0)
    scale = 1.0 / jnp.sqrt(var + BN_EPS)
    shift = -mean * scale
    scale2 = scale.reshape(Cout, 1)
    shift2 = shift.reshape(Cout, 1)

    # ------------------------------------------------------------------ kernel 2
    # Pure streaming pass: bf16 read (half the bytes of before), f32 write.
    def bn_relu_kernel(h_ref, sc_ref, sh_ref, o_ref):
        sc = sc_ref[...]                                 # (Cout, 1) f32
        sh = sh_ref[...]
        for b in range(BS):
            y = h_ref[b].astype(jnp.float32) * sc + sh   # lane broadcast
            o_ref[b] = jnp.maximum(y, 0.0)

    blk2_bytes = (2 * (BS * Cout * Lc * 2) + 2 * (2 * Cout * 4)
                  + 2 * (BS * Cout * Lc * 4))

    h_act = pl.pallas_call(
        bn_relu_kernel,
        grid=(N // BS,),
        in_specs=[
            pl.BlockSpec((BS, Cout, Lc), lambda n: (n, 0, 0)),
            pl.BlockSpec((Cout, 1), lambda n: (0, 0)),
            pl.BlockSpec((Cout, 1), lambda n: (0, 0)),
        ],
        out_specs=pl.BlockSpec((BS, Cout, Lc), lambda n: (n, 0, 0)),
        out_shape=jax.ShapeDtypeStruct((N, Cout, Lc), jnp.float32),
        compiler_params=pltpu.CompilerParams(
            dimension_semantics=("parallel",),
            vmem_limit_bytes=_vmem_limit(blk2_bytes)),
    )(h_raw, scale2, shift2)

    # (N, Cout, H*Wp) is already NCHW-major: reshape and drop the 2 junk columns.
    h = h_act.reshape(N, Cout, H, Wp)[:, :, :, :W]
    nm = nm_flat.reshape(N, 1, H, Wp)[:, :, :, :W]
    new_mask = jnp.broadcast_to(nm, (N, Cout, H, W))
    return h, new_mask


# ---------------------------------------------------------------------------
# Pure-JAX f32 reference (mirrors the PyTorch forward) for validation.
# ---------------------------------------------------------------------------
def _reference(x, m, w):
    dn = ("NCHW", "OIHW", "NCHW")
    xm = x * m
    out = jax.lax.conv_general_dilated(xm, w, (1, 1), ((PAD, PAD), (PAD, PAD)),
                                       dimension_numbers=dn)
    out_mask = jax.lax.conv_general_dilated(m, jnp.ones_like(w), (1, 1),
                                            ((PAD, PAD), (PAD, PAD)),
                                            dimension_numbers=dn)
    holes = out_mask == 0.0
    mask_sum = jnp.where(holes, 1.0, out_mask)
    out = jnp.where(holes, 0.0, out / mask_sum)
    new_mask = jnp.where(holes, 0.0, 1.0)
    mean = jnp.mean(out, axis=(0, 2, 3), keepdims=True)
    var = jnp.mean((out - mean) ** 2, axis=(0, 2, 3), keepdims=True)
    h = (out - mean) / jnp.sqrt(var + BN_EPS)
    return jnp.maximum(h, 0.0), new_mask


if __name__ == "__main__":
    # Small shapes consistent with PCBActiv(in_ch=4, out_ch=8, sample='none-3').
    N, Cin, Cout, H, W = 2, 4, 8, 16, 16

    key = jax.random.PRNGKey(0)
    kx_, kw_ = jax.random.split(key)

    x = jax.random.normal(kx_, (N, Cin, H, W), dtype=jnp.float32)

    # Binary mask with a contiguous hole so the no_update_holes path is exercised.
    mask = jnp.ones((N, Cin, H, W), dtype=jnp.float32)
    mask = mask.at[:, :, 4:9, 4:9].set(0.0)

    # Deterministic kaiming_normal_ (a=0, fan_in) init: std = sqrt(2 / (Cin*K*K)).
    fan_in = Cin * K * K
    std = math.sqrt(2.0 / fan_in)
    weight = std * jax.random.normal(kw_, (Cout, Cin, K, K), dtype=jnp.float32)

    fwd = jax.jit(pcb_activ_forward)
    h, new_mask = fwd(x, mask, weight)
    h = jax.block_until_ready(h)
    new_mask = jax.block_until_ready(new_mask)

    h_ref, nm_ref = _reference(x, mask, weight)
    assert h.shape == (N, Cout, H, W) and new_mask.shape == (N, Cout, H, W)
    # Tolerance accounts for the bf16 MXU path (inputs/weights in bf16, f32
    # accumulation) plus the bf16 intermediate h_raw; structural/layout errors
    # would be O(1).
    err = float(jnp.max(jnp.abs(h - h_ref)))
    assert err < 8e-2, f"activation mismatch (max abs err {err})"
    assert float(jnp.max(jnp.abs(new_mask - nm_ref))) < 1e-6, "mask mismatch"

    print("KERNEL_OK")
</pallas_src>

<mosaic_0001>
module attributes {stable_mosaic.version = 11 : i64} {
  func.func @pconv_kernel(%arg0: i32, %arg1: memref<2x4x326xbf16, #tpu.memory_space<vmem>>, %arg2: memref<2x4x326xbf16, #tpu.memory_space<vmem>>, %arg3: memref<9x72xbf16, #tpu.memory_space<vmem>>, %arg4: memref<1x288xf32, #tpu.memory_space<vmem>>, %arg5: memref<2x8x288xbf16, #tpu.memory_space<vmem>>, %arg6: memref<2x1x288xf32, #tpu.memory_space<vmem>>, %arg7: memref<2x8x1xf32, #tpu.memory_space<vmem>>, %arg8: memref<2x8x1xf32, #tpu.memory_space<vmem>>, %arg9: memref<72x288xbf16, #tpu.memory_space<vmem>>) attributes {dimension_semantics = [#tpu.dimension_semantics<parallel>], iteration_bounds = array<i64: 1>, scalar_prefetch = 0 : i64, scratch_operands = 1 : i64, tpu.core_type = #tpu.core_type<tc>, window_params = [{transform_indices = @transform_0, window_bounds = array<i64: 2, 4, 326>}, {transform_indices = @transform_1, window_bounds = array<i64: 2, 4, 326>}, {pipeline_mode = #tpu.pipeline_mode<synchronous>, transform_indices = @transform_2, window_bounds = array<i64: 9, 72>}, {pipeline_mode = #tpu.pipeline_mode<synchronous>, transform_indices = @transform_3, window_bounds = array<i64: 1, 288>}, {transform_indices = @transform_4, window_bounds = array<i64: 2, 8, 288>}, {transform_indices = @transform_5, window_bounds = array<i64: 2, 1, 288>}, {transform_indices = @transform_6, window_bounds = array<i64: 2, 8, 1>}, {transform_indices = @transform_7, window_bounds = array<i64: 2, 8, 1>}]} {
    %c0 = arith.constant 0 : index
    %c0_0 = arith.constant 0 : index
    %0 = vector.load %arg4[%c0, %c0_0] : memref<1x288xf32, #tpu.memory_space<vmem>>, vector<1x288xf32>
    %c0_1 = arith.constant 0 : index
    %c0_2 = arith.constant 0 : index
    %c0_3 = arith.constant 0 : index
    %1 = vector.load %arg1[%c0_1, %c0_2, %c0_3] : memref<2x4x326xbf16, #tpu.memory_space<vmem>>, vector<1x4x326xbf16>
    %2 = vector.shape_cast %1 : vector<1x4x326xbf16> to vector<4x326xbf16>
    %c0_4 = arith.constant 0 : index
    %c0_5 = arith.constant 0 : index
    %c0_6 = arith.constant 0 : index
    %3 = vector.load %arg2[%c0_4, %c0_5, %c0_6] : memref<2x4x326xbf16, #tpu.memory_space<vmem>>, vector<1x4x326xbf16>
    %4 = vector.shape_cast %3 : vector<1x4x326xbf16> to vector<4x326xbf16>
    %5 = arith.mulf %2, %4 : vector<4x326xbf16>
    %6 = vector.extract_strided_slice %5 {offsets = [0, 0], sizes = [4, 288], strides = [1, 1]} : vector<4x326xbf16> to vector<4x288xbf16>
    %c0_7 = arith.constant 0 : index
    %c0_8 = arith.constant 0 : index
    %7 = vector.load %arg9[%c0_7, %c0_8] : memref<72x288xbf16, #tpu.memory_space<vmem>>, vector<4x288xbf16>
    tpu.vector_store %arg9[%c0_7, %c0_8], %6 {strides = array<i32>} : memref<72x288xbf16, #tpu.memory_space<vmem>>, vector<4x288xbf16>,
    %8 = vector.extract_strided_slice %4 {offsets = [0, 0], sizes = [4, 288], strides = [1, 1]} : vector<4x326xbf16> to vector<4x288xbf16>
    %c36 = arith.constant 36 : index
    %c0_9 = arith.constant 0 : index
    %9 = vector.load %arg9[%c36, %c0_9] : memref<72x288xbf16, #tpu.memory_space<vmem>>, vector<4x288xbf16>
    tpu.vector_store %arg9[%c36, %c0_9], %8 {strides = array<i32>} : memref<72x288xbf16, #tpu.memory_space<vmem>>, vector<4x288xbf16>,
    %10 = vector.extract_strided_slice %5 {offsets = [0, 1], sizes = [4, 288], strides = [1, 1]} : vector<4x326xbf16> to vector<4x288xbf16>
    %c4 = arith.constant 4 : index
    %c0_10 = arith.constant 0 : index
    %11 = vector.load %arg9[%c4, %c0_10] : memref<72x288xbf16, #tpu.memory_space<vmem>>, vector<4x288xbf16>
    tpu.vector_store %arg9[%c4, %c0_10], %10 {strides = array<i32>} : memref<72x288xbf16, #tpu.memory_space<vmem>>, vector<4x288xbf16>,
    %12 = vector.extract_strided_slice %4 {offsets = [0, 1], sizes = [4, 288], strides = [1, 1]} : vector<4x326xbf16> to vector<4x288xbf16>
    %c40 = arith.constant 40 : index
    %c0_11 = arith.constant 0 : index
    %13 = vector.load %arg9[%c40, %c0_11] : memref<72x288xbf16, #tpu.memory_space<vmem>>, vector<4x288xbf16>
    tpu.vector_store %arg9[%c40, %c0_11], %12 {strides = array<i32>} : memref<72x288xbf16, #tpu.memory_space<vmem>>, vector<4x288xbf16>,
    %14 = vector.extract_strided_slice %5 {offsets = [0, 2], sizes = [4, 288], strides = [1, 1]} : vector<4x326xbf16> to vector<4x288xbf16>
    %c8 = arith.constant 8 : index
    %c0_12 = arith.constant 0 : index
    %15 = vector.load %arg9[%c8, %c0_12] : memref<72x288xbf16, #tpu.memory_space<vmem>>, vector<4x288xbf16>
    tpu.vector_store %arg9[%c8, %c0_12], %14 {strides = array<i32>} : memref<72x288xbf16, #tpu.memory_space<vmem>>, vector<4x288xbf16>,
    %16 = vector.extract_strided_slice %4 {offsets = [0, 2], sizes = [4, 288], strides = [1, 1]} : vector<4x326xbf16> to vector<4x288xbf16>
    %c44 = arith.constant 44 : index
    %c0_13 = arith.constant 0 : index
    %17 = vector.load %arg9[%c44, %c0_13] : memref<72x288xbf16, #tpu.memory_space<vmem>>, vector<4x288xbf16>
    tpu.vector_store %arg9[%c44, %c0_13], %16 {strides = array<i32>} : memref<72x288xbf16, #tpu.memory_space<vmem>>, vector<4x288xbf16>,
    %18 = vector.extract_strided_slice %5 {offsets = [0, 18], sizes = [4, 288], strides = [1, 1]} : vector<4x326xbf16> to vector<4x288xbf16>
    %c12 = arith.constant 12 : index
    %c0_14 = arith.constant 0 : index
    %19 = vector.load %arg9[%c12, %c0_14] : memref<72x288xbf16, #tpu.memory_space<vmem>>, vector<4x288xbf16>
    tpu.vector_store %arg9[%c12, %c0_14], %18 {strides = array<i32>} : memref<72x288xbf16, #tpu.memory_space<vmem>>, vector<4x288xbf16>,
    %20 = vector.extract_strided_slice %4 {offsets = [0, 18], sizes = [4, 288], strides = [1, 1]} : vector<4x326xbf16> to vector<4x288xbf16>
    %c48 = arith.constant 48 : index
    %c0_15 = arith.constant 0 : index
    %21 = vector.load %arg9[%c48, %c0_15] : memref<72x288xbf16, #tpu.memory_space<vmem>>, vector<4x288xbf16>
    tpu.vector_store %arg9[%c48, %c0_15], %20 {strides = array<i32>} : memref<72x288xbf16, #tpu.memory_space<vmem>>, vector<4x288xbf16>,
    %22 = vector.extract_strided_slice %5 {offsets = [0, 19], sizes = [4, 288], strides = [1, 1]} : vector<4x326xbf16> to vector<4x288xbf16>
    %c16 = arith.constant 16 : index
    %c0_16 = arith.constant 0 : index
    %23 = vector.load %arg9[%c16, %c0_16] : memref<72x288xbf16, #tpu.memory_space<vmem>>, vector<4x288xbf16>
    tpu.vector_store %arg9[%c16, %c0_16], %22 {strides = array<i32>} : memref<72x288xbf16, #tpu.memory_space<vmem>>, vector<4x288xbf16>,
    %24 = vector.extract_strided_slice %4 {offsets = [0, 19], sizes = [4, 288], strides = [1, 1]} : vector<4x326xbf16> to vector<4x288xbf16>
    %c52 = arith.constant 52 : index
    %c0_17 = arith.constant 0 : index
    %25 = vector.load %arg9[%c52, %c0_17] : memref<72x288xbf16, #tpu.memory_space<vmem>>, vector<4x288xbf16>
    tpu.vector_store %arg9[%c52, %c0_17], %24 {strides = array<i32>} : memref<72x288xbf16, #tpu.memory_space<vmem>>, vector<4x288xbf16>,
    %26 = vector.extract_strided_slice %5 {offsets = [0, 20], sizes = [4, 288], strides = [1, 1]} : vector<4x326xbf16> to vector<4x288xbf16>
    %c20 = arith.constant 20 : index
    %c0_18 = arith.constant 0 : index
    %27 = vector.load %arg9[%c20, %c0_18] : memref<72x288xbf16, #tpu.memory_space<vmem>>, vector<4x288xbf16>
    tpu.vector_store %arg9[%c20, %c0_18], %26 {strides = array<i32>} : memref<72x288xbf16, #tpu.memory_space<vmem>>, vector<4x288xbf16>,
    %28 = vector.extract_strided_slice %4 {offsets = [0, 20], sizes = [4, 288], strides = [1, 1]} : vector<4x326xbf16> to vector<4x288xbf16>
    %c56 = arith.constant 56 : index
    %c0_19 = arith.constant 0 : index
    %29 = vector.load %arg9[%c56, %c0_19] : memref<72x288xbf16, #tpu.memory_space<vmem>>, vector<4x288xbf16>
    tpu.vector_store %arg9[%c56, %c0_19], %28 {strides = array<i32>} : memref<72x288xbf16, #tpu.memory_space<vmem>>, vector<4x288xbf16>,
    %30 = vector.extract_strided_slice %5 {offsets = [0, 36], sizes = [4, 288], strides = [1, 1]} : vector<4x326xbf16> to vector<4x288xbf16>
    %c24 = arith.constant 24 : index
    %c0_20 = arith.constant 0 : index
    %31 = vector.load %arg9[%c24, %c0_20] : memref<72x288xbf16, #tpu.memory_space<vmem>>, vector<4x288xbf16>
    tpu.vector_store %arg9[%c24, %c0_20], %30 {strides = array<i32>} : memref<72x288xbf16, #tpu.memory_space<vmem>>, vector<4x288xbf16>,
    %32 = vector.extract_strided_slice %4 {offsets = [0, 36], sizes = [4, 288], strides = [1, 1]} : vector<4x326xbf16> to vector<4x288xbf16>
    %c60 = arith.constant 60 : index
    %c0_21 = arith.constant 0 : index
    %33 = vector.load %arg9[%c60, %c0_21] : memref<72x288xbf16, #tpu.memory_space<vmem>>, vector<4x288xbf16>
    tpu.vector_store %arg9[%c60, %c0_21], %32 {strides = array<i32>} : memref<72x288xbf16, #tpu.memory_space<vmem>>, vector<4x288xbf16>,
    %34 = vector.extract_strided_slice %5 {offsets = [0, 37], sizes = [4, 288], strides = [1, 1]} : vector<4x326xbf16> to vector<4x288xbf16>
    %c28 = arith.constant 28 : index
    %c0_22 = arith.constant 0 : index
    %35 = vector.load %arg9[%c28, %c0_22] : memref<72x288xbf16, #tpu.memory_space<vmem>>, vector<4x288xbf16>
    tpu.vector_store %arg9[%c28, %c0_22], %34 {strides = array<i32>} : memref<72x288xbf16, #tpu.memory_space<vmem>>, vector<4x288xbf16>,
    %36 = vector.extract_strided_slice %4 {offsets = [0, 37], sizes = [4, 288], strides = [1, 1]} : vector<4x326xbf16> to vector<4x288xbf16>
    %c64 = arith.constant 64 : index
    %c0_23 = arith.constant 0 : index
    %37 = vector.load %arg9[%c64, %c0_23] : memref<72x288xbf16, #tpu.memory_space<vmem>>, vector<4x288xbf16>
    tpu.vector_store %arg9[%c64, %c0_23], %36 {strides = array<i32>} : memref<72x288xbf16, #tpu.memory_space<vmem>>, vector<4x288xbf16>,
    %38 = vector.extract_strided_slice %5 {offsets = [0, 38], sizes = [4, 288], strides = [1, 1]} : vector<4x326xbf16> to vector<4x288xbf16>
    %c32 = arith.constant 32 : index
    %c0_24 = arith.constant 0 : index
    %39 = vector.load %arg9[%c32, %c0_24] : memref<72x288xbf16, #tpu.memory_space<vmem>>, vector<4x288xbf16>
    tpu.vector_store %arg9[%c32, %c0_24], %38 {strides = array<i32>} : memref<72x288xbf16, #tpu.memory_space<vmem>>, vector<4x288xbf16>,
    %40 = vector.extract_strided_slice %4 {offsets = [0, 38], sizes = [4, 288], strides = [1, 1]} : vector<4x326xbf16> to vector<4x288xbf16>
    %c68 = arith.constant 68 : index
    %c0_25 = arith.constant 0 : index
    %41 = vector.load %arg9[%c68, %c0_25] : memref<72x288xbf16, #tpu.memory_space<vmem>>, vector<4x288xbf16>
    tpu.vector_store %arg9[%c68, %c0_25], %40 {strides = array<i32>} : memref<72x288xbf16, #tpu.memory_space<vmem>>, vector<4x288xbf16>,
    %c0_26 = arith.constant 0 : index
    %c0_27 = arith.constant 0 : index
    %42 = vector.load %arg3[%c0_26, %c0_27] : memref<9x72xbf16, #tpu.memory_space<vmem>>, vector<9x72xbf16>
    %c0_28 = arith.constant 0 : index
    %c0_29 = arith.constant 0 : index
    %43 = vector.load %arg9[%c0_28, %c0_29] : memref<72x288xbf16, #tpu.memory_space<vmem>>, vector<72x288xbf16>
    %cst = arith.constant dense<0.000000e+00> : vector<9x288xf32>
    %44 = tpu.matmul %42, %43, %cst {dimension_numbers = #tpu.dot_dimension_numbers<[1], [0], [0], [1], [0, 0, 1, 1], [], []>} : vector<9x72xbf16>, vector<72x288xbf16>, vector<9x288xf32> -> vector<9x288xf32>
    %45 = vector.extract_strided_slice %44 {offsets = [0, 0], sizes = [8, 288], strides = [1, 1]} : vector<9x288xf32> to vector<8x288xf32>
    %46 = vector.extract_strided_slice %44 {offsets = [8, 0], sizes = [1, 288], strides = [1, 1]} : vector<9x288xf32> to vector<1x288xf32>
    %cst_30 = arith.constant 0.000000e+00 : f32
    %47 = vector.broadcast %cst_30 : f32 to vector<1x288xf32>
    %48 = arith.cmpf oeq, %46, %47 : vector<1x288xf32>
    %cst_31 = arith.constant 1.000000e+00 : f32
    %49 = vector.broadcast %cst_31 : f32 to vector<1x288xf32>
    %50 = arith.select %48, %49, %46 : vector<1x288xi1>, vector<1x288xf32>
    %cst_32 = arith.constant 1.000000e+00 : f32
    %51 = vector.broadcast %cst_32 : f32 to vector<1x288xf32>
    %52 = arith.divf %51, %50 : vector<1x288xf32>
    %cst_33 = arith.constant dense<true> : vector<1x288xi1>
    %53 = arith.xori %48, %cst_33 : vector<1x288xi1>
    %cst_34 = arith.constant 5.000000e-01 : f32
    %54 = vector.broadcast %cst_34 : f32 to vector<1x288xf32>
    %55 = arith.cmpf ogt, %0, %54 : vector<1x288xf32>
    %56 = arith.andi %53, %55 : vector<1x288xi1>
    %57 = vector.broadcast %52 : vector<1x288xf32> to vector<8x288xf32>
    %58 = arith.mulf %45, %57 : vector<8x288xf32>
    %cst_35 = arith.constant 0.000000e+00 : f32
    %59 = vector.shape_cast %56 : vector<1x288xi1> to vector<1x288xi1>
    %60 = vector.broadcast %59 : vector<1x288xi1> to vector<8x288xi1>
    %61 = vector.broadcast %cst_35 : f32 to vector<8x288xf32>
    %62 = arith.select %60, %58, %61 : vector<8x288xi1>, vector<8x288xf32>
    %63 = arith.truncf %62 : vector<8x288xf32> to vector<8x288xbf16>
    %c0_36 = arith.constant 0 : index
    %c0_37 = arith.constant 0 : index
    %c0_38 = arith.constant 0 : index
    %64 = vector.load %arg5[%c0_36, %c0_37, %c0_38] : memref<2x8x288xbf16, #tpu.memory_space<vmem>>, vector<1x8x288xbf16>
    %65 = vector.shape_cast %64 : vector<1x8x288xbf16> to vector<8x288xbf16>
    %66 = vector.shape_cast %63 : vector<8x288xbf16> to vector<1x8x288xbf16>
    tpu.vector_store %arg5[%c0_36, %c0_37, %c0_38], %66 {strides = array<i32>} : memref<2x8x288xbf16, #tpu.memory_space<vmem>>, vector<1x8x288xbf16>,
    %67 = arith.extui %56 : vector<1x288xi1> to vector<1x288xi32>
    %68 = arith.sitofp %67 : vector<1x288xi32> to vector<1x288xf32>
    %c0_39 = arith.constant 0 : index
    %c0_40 = arith.constant 0 : index
    %c0_41 = arith.constant 0 : index
    %69 = vector.load %arg6[%c0_39, %c0_40, %c0_41] : memref<2x1x288xf32, #tpu.memory_space<vmem>>, vector<1x1x288xf32>
    %70 = vector.shape_cast %69 : vector<1x1x288xf32> to vector<1x288xf32>
    %71 = vector.shape_cast %68 : vector<1x288xf32> to vector<1x1x288xf32>
    tpu.vector_store %arg6[%c0_39, %c0_40, %c0_41], %71 {strides = array<i32>} : memref<2x1x288xf32, #tpu.memory_space<vmem>>, vector<1x1x288xf32>,
    %cst_42 = arith.constant dense<0.000000e+00> : vector<8xf32>
    %72 = vector.multi_reduction <add>, %62, %cst_42 [1] : vector<8x288xf32> to vector<8xf32>
    %73 = vector.shape_cast %72 : vector<8xf32> to vector<8x1xf32>
    %c0_43 = arith.constant 0 : index
    %c0_44 = arith.constant 0 : index
    %c0_45 = arith.constant 0 : index
    %74 = vector.load %arg7[%c0_43, %c0_44, %c0_45] : memref<2x8x1xf32, #tpu.memory_space<vmem>>, vector<1x8x1xf32>
    %75 = vector.shape_cast %74 : vector<1x8x1xf32> to vector<8x1xf32>
    %76 = vector.shape_cast %73 : vector<8x1xf32> to vector<1x8x1xf32>
    tpu.vector_store %arg7[%c0_43, %c0_44, %c0_45], %76 {strides = array<i32>} : memref<2x8x1xf32, #tpu.memory_space<vmem>>, vector<1x8x1xf32>,
    %77 = arith.mulf %62, %62 : vector<8x288xf32>
    %cst_46 = arith.constant dense<0.000000e+00> : vector<8xf32>
    %78 = vector.multi_reduction <add>, %77, %cst_46 [1] : vector<8x288xf32> to vector<8xf32>
    %79 = vector.shape_cast %78 : vector<8xf32> to vector<8x1xf32>
    %c0_47 = arith.constant 0 : index
    %c0_48 = arith.constant 0 : index
    %c0_49 = arith.constant 0 : index
    %80 = vector.load %arg8[%c0_47, %c0_48, %c0_49] : memref<2x8x1xf32, #tpu.memory_space<vmem>>, vector<1x8x1xf32>
    %81 = vector.shape_cast %80 : vector<1x8x1xf32> to vector<8x1xf32>
    %82 = vector.shape_cast %79 : vector<8x1xf32> to vector<1x8x1xf32>
    tpu.vector_store %arg8[%c0_47, %c0_48, %c0_49], %82 {strides = array<i32>} : memref<2x8x1xf32, #tpu.memory_space<vmem>>, vector<1x8x1xf32>,
    %c1 = arith.constant 1 : index
    %c0_50 = arith.constant 0 : index
    %c0_51 = arith.constant 0 : index
    %83 = vector.load %arg1[%c1, %c0_50, %c0_51] : memref<2x4x326xbf16, #tpu.memory_space<vmem>>, vector<1x4x326xbf16>
    %84 = vector.shape_cast %83 : vector<1x4x326xbf16> to vector<4x326xbf16>
    %c1_52 = arith.constant 1 : index
    %c0_53 = arith.constant 0 : index
    %c0_54 = arith.constant 0 : index
    %85 = vector.load %arg2[%c1_52, %c0_53, %c0_54] : memref<2x4x326xbf16, #tpu.memory_space<vmem>>, vector<1x4x326xbf16>
    %86 = vector.shape_cast %85 : vector<1x4x326xbf16> to vector<4x326xbf16>
    %87 = arith.mulf %84, %86 : vector<4x326xbf16>
    %88 = vector.extract_strided_slice %87 {offsets = [0, 0], sizes = [4, 288], strides = [1, 1]} : vector<4x326xbf16> to vector<4x288xbf16>
    %c0_55 = arith.constant 0 : index
    %c0_56 = arith.constant 0 : index
    %89 = vector.load %arg9[%c0_55, %c0_56] : memref<72x288xbf16, #tpu.memory_space<vmem>>, vector<4x288xbf16>
    tpu.vector_store %arg9[%c0_55, %c0_56], %88 {strides = array<i32>} : memref<72x288xbf16, #tpu.memory_space<vmem>>, vector<4x288xbf16>,
    %90 = vector.extract_strided_slice %86 {offsets = [0, 0], sizes = [4, 288], strides = [1, 1]} : vector<4x326xbf16> to vector<4x288xbf16>
    %c36_57 = arith.constant 36 : index
    %c0_58 = arith.constant 0 : index
    %91 = vector.load %arg9[%c36_57, %c0_58] : memref<72x288xbf16, #tpu.memory_space<vmem>>, vector<4x288xbf16>
    tpu.vector_store %arg9[%c36_57, %c0_58], %90 {strides = array<i32>} : memref<72x288xbf16, #tpu.memory_space<vmem>>, vector<4x288xbf16>,
    %92 = vector.extract_strided_slice %87 {offsets = [0, 1], sizes = [4, 288], strides = [1, 1]} : vector<4x326xbf16> to vector<4x288xbf16>
    %c4_59 = arith.constant 4 : index
    %c0_60 = arith.constant 0 : index
    %93 = vector.load %arg9[%c4_59, %c0_60] : memref<72x288xbf16, #tpu.memory_space<vmem>>, vector<4x288xbf16>
    tpu.vector_store %arg9[%c4_59, %c0_60], %92 {strides = array<i32>} : memref<72x288xbf16, #tpu.memory_space<vmem>>, vector<4x288xbf16>,
    %94 = vector.extract_strided_slice %86 {offsets = [0, 1], sizes = [4, 288], strides = [1, 1]} : vector<4x326xbf16> to vector<4x288xbf16>
    %c40_61 = arith.constant 40 : index
    %c0_62 = arith.constant 0 : index
    %95 = vector.load %arg9[%c40_61, %c0_62] : memref<72x288xbf16, #tpu.memory_space<vmem>>, vector<4x288xbf16>
    tpu.vector_store %arg9[%c40_61, %c0_62], %94 {strides = array<i32>} : memref<72x288xbf16, #tpu.memory_space<vmem>>, vector<4x288xbf16>,
    %96 = vector.extract_strided_slice %87 {offsets = [0, 2], sizes = [4, 288], strides = [1, 1]} : vector<4x326xbf16> to vector<4x288xbf16>
    %c8_63 = arith.constant 8 : index
    %c0_64 = arith.constant 0 : index
    %97 = vector.load %arg9[%c8_63, %c0_64] : memref<72x288xbf16, #tpu.memory_space<vmem>>, vector<4x288xbf16>
    tpu.vector_store %arg9[%c8_63, %c0_64], %96 {strides = array<i32>} : memref<72x288xbf16, #tpu.memory_space<vmem>>, vector<4x288xbf16>,
    %98 = vector.extract_strided_slice %86 {offsets = [0, 2], sizes = [4, 288], strides = [1, 1]} : vector<4x326xbf16> to vector<4x288xbf16>
    %c44_65 = arith.constant 44 : index
    %c0_66 = arith.constant 0 : index
    %99 = vector.load %arg9[%c44_65, %c0_66] : memref<72x288xbf16, #tpu.memory_space<vmem>>, vector<4x288xbf16>
    tpu.vector_store %arg9[%c44_65, %c0_66], %98 {strides = array<i32>} : memref<72x288xbf16, #tpu.memory_space<vmem>>, vector<4x288xbf16>,
    %100 = vector.extract_strided_slice %87 {offsets = [0, 18], sizes = [4, 288], strides = [1, 1]} : vector<4x326xbf16> to vector<4x288xbf16>
    %c12_67 = arith.constant 12 : index
    %c0_68 = arith.constant 0 : index
    %101 = vector.load %arg9[%c12_67, %c0_68] : memref<72x288xbf16, #tpu.memory_space<vmem>>, vector<4x288xbf16>
    tpu.vector_store %arg9[%c12_67, %c0_68], %100 {strides = array<i32>} : memref<72x288xbf16, #tpu.memory_space<vmem>>, vector<4x288xbf16>,
    %102 = vector.extract_strided_slice %86 {offsets = [0, 18], sizes = [4, 288], strides = [1, 1]} : vector<4x326xbf16> to vector<4x288xbf16>
    %c48_69 = arith.constant 48 : index
    %c0_70 = arith.constant 0 : index
    %103 = vector.load %arg9[%c48_69, %c0_70] : memref<72x288xbf16, #tpu.memory_space<vmem>>, vector<4x288xbf16>
    tpu.vector_store %arg9[%c48_69, %c0_70], %102 {strides = array<i32>} : memref<72x288xbf16, #tpu.memory_space<vmem>>, vector<4x288xbf16>,
    %104 = vector.extract_strided_slice %87 {offsets = [0, 19], sizes = [4, 288], strides = [1, 1]} : vector<4x326xbf16> to vector<4x288xbf16>
    %c16_71 = arith.constant 16 : index
    %c0_72 = arith.constant 0 : index
    %105 = vector.load %arg9[%c16_71, %c0_72] : memref<72x288xbf16, #tpu.memory_space<vmem>>, vector<4x288xbf16>
    tpu.vector_store %arg9[%c16_71, %c0_72], %104 {strides = array<i32>} : memref<72x288xbf16, #tpu.memory_space<vmem>>, vector<4x288xbf16>,
    %106 = vector.extract_strided_slice %86 {offsets = [0, 19], sizes = [4, 288], strides = [1, 1]} : vector<4x326xbf16> to vector<4x288xbf16>
    %c52_73 = arith.constant 52 : index
    %c0_74 = arith.constant 0 : index
    %107 = vector.load %arg9[%c52_73, %c0_74] : memref<72x288xbf16, #tpu.memory_space<vmem>>, vector<4x288xbf16>
    tpu.vector_store %arg9[%c52_73, %c0_74], %106 {strides = array<i32>} : memref<72x288xbf16, #tpu.memory_space<vmem>>, vector<4x288xbf16>,
    %108 = vector.extract_strided_slice %87 {offsets = [0, 20], sizes = [4, 288], strides = [1, 1]} : vector<4x326xbf16> to vector<4x288xbf16>
    %c20_75 = arith.constant 20 : index
    %c0_76 = arith.constant 0 : index
    %109 = vector.load %arg9[%c20_75, %c0_76] : memref<72x288xbf16, #tpu.memory_space<vmem>>, vector<4x288xbf16>
    tpu.vector_store %arg9[%c20_75, %c0_76], %108 {strides = array<i32>} : memref<72x288xbf16, #tpu.memory_space<vmem>>, vector<4x288xbf16>,
    %110 = vector.extract_strided_slice %86 {offsets = [0, 20], sizes = [4, 288], strides = [1, 1]} : vector<4x326xbf16> to vector<4x288xbf16>
    %c56_77 = arith.constant 56 : index
    %c0_78 = arith.constant 0 : index
    %111 = vector.load %arg9[%c56_77, %c0_78] : memref<72x288xbf16, #tpu.memory_space<vmem>>, vector<4x288xbf16>
    tpu.vector_store %arg9[%c56_77, %c0_78], %110 {strides = array<i32>} : memref<72x288xbf16, #tpu.memory_space<vmem>>, vector<4x288xbf16>,
    %112 = vector.extract_strided_slice %87 {offsets = [0, 36], sizes = [4, 288], strides = [1, 1]} : vector<4x326xbf16> to vector<4x288xbf16>
    %c24_79 = arith.constant 24 : index
    %c0_80 = arith.constant 0 : index
    %113 = vector.load %arg9[%c24_79, %c0_80] : memref<72x288xbf16, #tpu.memory_space<vmem>>, vector<4x288xbf16>
    tpu.vector_store %arg9[%c24_79, %c0_80], %112 {strides = array<i32>} : memref<72x288xbf16, #tpu.memory_space<vmem>>, vector<4x288xbf16>,
    %114 = vector.extract_strided_slice %86 {offsets = [0, 36], sizes = [4, 288], strides = [1, 1]} : vector<4x326xbf16> to vector<4x288xbf16>
    %c60_81 = arith.constant 60 : index
    %c0_82 = arith.constant 0 : index
    %115 = vector.load %arg9[%c60_81, %c0_82] : memref<72x288xbf16, #tpu.memory_space<vmem>>, vector<4x288xbf16>
    tpu.vector_store %arg9[%c60_81, %c0_82], %114 {strides = array<i32>} : memref<72x288xbf16, #tpu.memory_space<vmem>>, vector<4x288xbf16>,
    %116 = vector.extract_strided_slice %87 {offsets = [0, 37], sizes = [4, 288], strides = [1, 1]} : vector<4x326xbf16> to vector<4x288xbf16>
    %c28_83 = arith.constant 28 : index
    %c0_84 = arith.constant 0 : index
    %117 = vector.load %arg9[%c28_83, %c0_84] : memref<72x288xbf16, #tpu.memory_space<vmem>>, vector<4x288xbf16>
    tpu.vector_store %arg9[%c28_83, %c0_84], %116 {strides = array<i32>} : memref<72x288xbf16, #tpu.memory_space<vmem>>, vector<4x288xbf16>,
    %118 = vector.extract_strided_slice %86 {offsets = [0, 37], sizes = [4, 288], strides = [1, 1]} : vector<4x326xbf16> to vector<4x288xbf16>
    %c64_85 = arith.constant 64 : index
    %c0_86 = arith.constant 0 : index
    %119 = vector.load %arg9[%c64_85, %c0_86] : memref<72x288xbf16, #tpu.memory_space<vmem>>, vector<4x288xbf16>
    tpu.vector_store %arg9[%c64_85, %c0_86], %118 {strides = array<i32>} : memref<72x288xbf16, #tpu.memory_space<vmem>>, vector<4x288xbf16>,
    %120 = vector.extract_strided_slice %87 {offsets = [0, 38], sizes = [4, 288], strides = [1, 1]} : vector<4x326xbf16> to vector<4x288xbf16>
    %c32_87 = arith.constant 32 : index
    %c0_88 = arith.constant 0 : index
    %121 = vector.load %arg9[%c32_87, %c0_88] : memref<72x288xbf16, #tpu.memory_space<vmem>>, vector<4x288xbf16>
    tpu.vector_store %arg9[%c32_87, %c0_88], %120 {strides = array<i32>} : memref<72x288xbf16, #tpu.memory_space<vmem>>, vector<4x288xbf16>,
    %122 = vector.extract_strided_slice %86 {offsets = [0, 38], sizes = [4, 288], strides = [1, 1]} : vector<4x326xbf16> to vector<4x288xbf16>
    %c68_89 = arith.constant 68 : index
    %c0_90 = arith.constant 0 : index
    %123 = vector.load %arg9[%c68_89, %c0_90] : memref<72x288xbf16, #tpu.memory_space<vmem>>, vector<4x288xbf16>
    tpu.vector_store %arg9[%c68_89, %c0_90], %122 {strides = array<i32>} : memref<72x288xbf16, #tpu.memory_space<vmem>>, vector<4x288xbf16>,
    %c0_91 = arith.constant 0 : index
    %c0_92 = arith.constant 0 : index
    %124 = vector.load %arg3[%c0_91, %c0_92] : memref<9x72xbf16, #tpu.memory_space<vmem>>, vector<9x72xbf16>
    %c0_93 = arith.constant 0 : index
    %c0_94 = arith.constant 0 : index
    %125 = vector.load %arg9[%c0_93, %c0_94] : memref<72x288xbf16, #tpu.memory_space<vmem>>, vector<72x288xbf16>
    %cst_95 = arith.constant dense<0.000000e+00> : vector<9x288xf32>
    %126 = tpu.matmul %124, %125, %cst_95 {dimension_numbers = #tpu.dot_dimension_numbers<[1], [0], [0], [1], [0, 0, 1, 1], [], []>} : vector<9x72xbf16>, vector<72x288xbf16>, vector<9x288xf32> -> vector<9x288xf32>
    %127 = vector.extract_strided_slice %126 {offsets = [0, 0], sizes = [8, 288], strides = [1, 1]} : vector<9x288xf32> to vector<8x288xf32>
    %128 = vector.extract_strided_slice %126 {offsets = [8, 0], sizes = [1, 288], strides = [1, 1]} : vector<9x288xf32> to vector<1x288xf32>
    %cst_96 = arith.constant 0.000000e+00 : f32
    %129 = vector.broadcast %cst_96 : f32 to vector<1x288xf32>
    %130 = arith.cmpf oeq, %128, %129 : vector<1x288xf32>
    %cst_97 = arith.constant 1.000000e+00 : f32
    %131 = vector.broadcast %cst_97 : f32 to vector<1x288xf32>
    %132 = arith.select %130, %131, %128 : vector<1x288xi1>, vector<1x288xf32>
    %cst_98 = arith.constant 1.000000e+00 : f32
    %133 = vector.broadcast %cst_98 : f32 to vector<1x288xf32>
    %134 = arith.divf %133, %132 : vector<1x288xf32>
    %cst_99 = arith.constant dense<true> : vector<1x288xi1>
    %135 = arith.xori %130, %cst_99 : vector<1x288xi1>
    %cst_100 = arith.constant 5.000000e-01 : f32
    %136 = vector.broadcast %cst_100 : f32 to vector<1x288xf32>
    %137 = arith.cmpf ogt, %0, %136 : vector<1x288xf32>
    %138 = arith.andi %135, %137 : vector<1x288xi1>
    %139 = vector.broadcast %134 : vector<1x288xf32> to vector<8x288xf32>
    %140 = arith.mulf %127, %139 : vector<8x288xf32>
    %cst_101 = arith.constant 0.000000e+00 : f32
    %141 = vector.shape_cast %138 : vector<1x288xi1> to vector<1x288xi1>
    %142 = vector.broadcast %141 : vector<1x288xi1> to vector<8x288xi1>
    %143 = vector.broadcast %cst_101 : f32 to vector<8x288xf32>
    %144 = arith.select %142, %140, %143 : vector<8x288xi1>, vector<8x288xf32>
    %145 = arith.truncf %144 : vector<8x288xf32> to vector<8x288xbf16>
    %c1_102 = arith.constant 1 : index
    %c0_103 = arith.constant 0 : index
    %c0_104 = arith.constant 0 : index
    %146 = vector.load %arg5[%c1_102, %c0_103, %c0_104] : memref<2x8x288xbf16, #tpu.memory_space<vmem>>, vector<1x8x288xbf16>
    %147 = vector.shape_cast %146 : vector<1x8x288xbf16> to vector<8x288xbf16>
    %148 = vector.shape_cast %145 : vector<8x288xbf16> to vector<1x8x288xbf16>
    tpu.vector_store %arg5[%c1_102, %c0_103, %c0_104], %148 {strides = array<i32>} : memref<2x8x288xbf16, #tpu.memory_space<vmem>>, vector<1x8x288xbf16>,
    %149 = arith.extui %138 : vector<1x288xi1> to vector<1x288xi32>
    %150 = arith.sitofp %149 : vector<1x288xi32> to vector<1x288xf32>
    %c1_105 = arith.constant 1 : index
    %c0_106 = arith.constant 0 : index
    %c0_107 = arith.constant 0 : index
    %151 = vector.load %arg6[%c1_105, %c0_106, %c0_107] : memref<2x1x288xf32, #tpu.memory_space<vmem>>, vector<1x1x288xf32>
    %152 = vector.shape_cast %151 : vector<1x1x288xf32> to vector<1x288xf32>
    %153 = vector.shape_cast %150 : vector<1x288xf32> to vector<1x1x288xf32>
    tpu.vector_store %arg6[%c1_105, %c0_106, %c0_107], %153 {strides = array<i32>} : memref<2x1x288xf32, #tpu.memory_space<vmem>>, vector<1x1x288xf32>,
    %cst_108 = arith.constant dense<0.000000e+00> : vector<8xf32>
    %154 = vector.multi_reduction <add>, %144, %cst_108 [1] : vector<8x288xf32> to vector<8xf32>
    %155 = vector.shape_cast %154 : vector<8xf32> to vector<8x1xf32>
    %c1_109 = arith.constant 1 : index
    %c0_110 = arith.constant 0 : index
    %c0_111 = arith.constant 0 : index
    %156 = vector.load %arg7[%c1_109, %c0_110, %c0_111] : memref<2x8x1xf32, #tpu.memory_space<vmem>>, vector<1x8x1xf32>
    %157 = vector.shape_cast %156 : vector<1x8x1xf32> to vector<8x1xf32>
    %158 = vector.shape_cast %155 : vector<8x1xf32> to vector<1x8x1xf32>
    tpu.vector_store %arg7[%c1_109, %c0_110, %c0_111], %158 {strides = array<i32>} : memref<2x8x1xf32, #tpu.memory_space<vmem>>, vector<1x8x1xf32>,
    %159 = arith.mulf %144, %144 : vector<8x288xf32>
    %cst_112 = arith.constant dense<0.000000e+00> : vector<8xf32>
    %160 = vector.multi_reduction <add>, %159, %cst_112 [1] : vector<8x288xf32> to vector<8xf32>
    %161 = vector.shape_cast %160 : vector<8xf32> to vector<8x1xf32>
    %c1_113 = arith.constant 1 : index
    %c0_114 = arith.constant 0 : index
    %c0_115 = arith.constant 0 : index
    %162 = vector.load %arg8[%c1_113, %c0_114, %c0_115] : memref<2x8x1xf32, #tpu.memory_space<vmem>>, vector<1x8x1xf32>
    %163 = vector.shape_cast %162 : vector<1x8x1xf32> to vector<8x1xf32>
    %164 = vector.shape_cast %161 : vector<8x1xf32> to vector<1x8x1xf32>
    tpu.vector_store %arg8[%c1_113, %c0_114, %c0_115], %164 {strides = array<i32>} : memref<2x8x1xf32, #tpu.memory_space<vmem>>, vector<1x8x1xf32>,
    return
  }
  func.func @transform_0(%arg0: i32) -> (i32, i32, i32) {
    %c0_i32 = arith.constant 0 : i32
    %c0_i32_0 = arith.constant 0 : i32
    %c0_i32_1 = arith.constant 0 : i32
    return %arg0, %c0_i32, %c0_i32_0 : i32, i32, i32
  }
  func.func @transform_1(%arg0: i32) -> (i32, i32, i32) {
    %c0_i32 = arith.constant 0 : i32
    %c0_i32_0 = arith.constant 0 : i32
    %c0_i32_1 = arith.constant 0 : i32
    return %arg0, %c0_i32, %c0_i32_0 : i32, i32, i32
  }
  func.func @transform_2(%arg0: i32) -> (i32, i32) {
    %c0_i32 = arith.constant 0 : i32
    %c0_i32_0 = arith.constant 0 : i32
    %c0_i32_1 = arith.constant 0 : i32
    return %c0_i32, %c0_i32_0 : i32, i32
  }
  func.func @transform_3(%arg0: i32) -> (i32, i32) {
    %c0_i32 = arith.constant 0 : i32
    %c0_i32_0 = arith.constant 0 : i32
    %c0_i32_1 = arith.constant 0 : i32
    return %c0_i32, %c0_i32_0 : i32, i32
  }
  func.func @transform_4(%arg0: i32) -> (i32, i32, i32) {
    %c0_i32 = arith.constant 0 : i32
    %c0_i32_0 = arith.constant 0 : i32
    %c0_i32_1 = arith.constant 0 : i32
    return %arg0, %c0_i32, %c0_i32_0 : i32, i32, i32
  }
  func.func @transform_5(%arg0: i32) -> (i32, i32, i32) {
    %c0_i32 = arith.constant 0 : i32
    %c0_i32_0 = arith.constant 0 : i32
    %c0_i32_1 = arith.constant 0 : i32
    return %arg0, %c0_i32, %c0_i32_0 : i32, i32, i32
  }
  func.func @transform_6(%arg0: i32) -> (i32, i32, i32) {
    %c0_i32 = arith.constant 0 : i32
    %c0_i32_0 = arith.constant 0 : i32
    %c0_i32_1 = arith.constant 0 : i32
    return %arg0, %c0_i32, %c0_i32_0 : i32, i32, i32
  }
  func.func @transform_7(%arg0: i32) -> (i32, i32, i32) {
    %c0_i32 = arith.constant 0 : i32
    %c0_i32_0 = arith.constant 0 : i32
    %c0_i32_1 = arith.constant 0 : i32
    return %arg0, %c0_i32, %c0_i32_0 : i32, i32, i32
  }
}

module attributes {stable_mosaic.version = 11 : i64} {
  func.func @bn_relu_kernel(%arg0: i32, %arg1: memref<2x8x288xbf16, #tpu.memory_space<vmem>>, %arg2: memref<8x1xf32, #tpu.memory_space<vmem>>, %arg3: memref<8x1xf32, #tpu.memory_space<vmem>>, %arg4: memref<2x8x288xf32, #tpu.memory_space<vmem>>) attributes {dimension_semantics = [#tpu.dimension_semantics<parallel>], iteration_bounds = array<i64: 1>, scalar_prefetch = 0 : i64, scratch_operands = 0 : i64, tpu.core_type = #tpu.core_type<tc>, window_params = [{transform_indices = @transform_0, window_bounds = array<i64: 2, 8, 288>}, {pipeline_mode = #tpu.pipeline_mode<synchronous>, transform_indices = @transform_1, window_bounds = array<i64: 8, 1>}, {pipeline_mode = #tpu.pipeline_mode<synchronous>, transform_indices = @transform_2, window_bounds = array<i64: 8, 1>}, {transform_indices = @transform_3, window_bounds = array<i64: 2, 8, 288>}]} {
    %c0 = arith.constant 0 : index
    %c0_0 = arith.constant 0 : index
    %0 = vector.load %arg2[%c0, %c0_0] : memref<8x1xf32, #tpu.memory_space<vmem>>, vector<8x1xf32>
    %c0_1 = arith.constant 0 : index
    %c0_2 = arith.constant 0 : index
    %1 = vector.load %arg3[%c0_1, %c0_2] : memref<8x1xf32, #tpu.memory_space<vmem>>, vector<8x1xf32>
    %c0_3 = arith.constant 0 : index
    %c0_4 = arith.constant 0 : index
    %c0_5 = arith.constant 0 : index
    %2 = vector.load %arg1[%c0_3, %c0_4, %c0_5] : memref<2x8x288xbf16, #tpu.memory_space<vmem>>, vector<1x8x288xbf16>
    %3 = vector.shape_cast %2 : vector<1x8x288xbf16> to vector<8x288xbf16>
    %4 = arith.extf %3 : vector<8x288xbf16> to vector<8x288xf32>
    %5 = vector.broadcast %0 : vector<8x1xf32> to vector<8x288xf32>
    %6 = arith.mulf %4, %5 : vector<8x288xf32>
    %7 = vector.broadcast %1 : vector<8x1xf32> to vector<8x288xf32>
    %8 = arith.addf %6, %7 : vector<8x288xf32>
    %cst = arith.constant 0.000000e+00 : f32
    %9 = vector.broadcast %cst : f32 to vector<8x288xf32>
    %10 = arith.maximumf %8, %9 : vector<8x288xf32>
    %c0_6 = arith.constant 0 : index
    %c0_7 = arith.constant 0 : index
    %c0_8 = arith.constant 0 : index
    %11 = vector.load %arg4[%c0_6, %c0_7, %c0_8] : memref<2x8x288xf32, #tpu.memory_space<vmem>>, vector<1x8x288xf32>
    %12 = vector.shape_cast %11 : vector<1x8x288xf32> to vector<8x288xf32>
    %13 = vector.shape_cast %10 : vector<8x288xf32> to vector<1x8x288xf32>
    tpu.vector_store %arg4[%c0_6, %c0_7, %c0_8], %13 {strides = array<i32>} : memref<2x8x288xf32, #tpu.memory_space<vmem>>, vector<1x8x288xf32>,
    %c1 = arith.constant 1 : index
    %c0_9 = arith.constant 0 : index
    %c0_10 = arith.constant 0 : index
    %14 = vector.load %arg1[%c1, %c0_9, %c0_10] : memref<2x8x288xbf16, #tpu.memory_space<vmem>>, vector<1x8x288xbf16>
    %15 = vector.shape_cast %14 : vector<1x8x288xbf16> to vector<8x288xbf16>
    %16 = arith.extf %15 : vector<8x288xbf16> to vector<8x288xf32>
    %17 = vector.broadcast %0 : vector<8x1xf32> to vector<8x288xf32>
    %18 = arith.mulf %16, %17 : vector<8x288xf32>
    %19 = vector.broadcast %1 : vector<8x1xf32> to vector<8x288xf32>
    %20 = arith.addf %18, %19 : vector<8x288xf32>
    %cst_11 = arith.constant 0.000000e+00 : f32
    %21 = vector.broadcast %cst_11 : f32 to vector<8x288xf32>
    %22 = arith.maximumf %20, %21 : vector<8x288xf32>
    %c1_12 = arith.constant 1 : index
    %c0_13 = arith.constant 0 : index
    %c0_14 = arith.constant 0 : index
    %23 = vector.load %arg4[%c1_12, %c0_13, %c0_14] : memref<2x8x288xf32, #tpu.memory_space<vmem>>, vector<1x8x288xf32>
    %24 = vector.shape_cast %23 : vector<1x8x288xf32> to vector<8x288xf32>
    %25 = vector.shape_cast %22 : vector<8x288xf32> to vector<1x8x288xf32>
    tpu.vector_store %arg4[%c1_12, %c0_13, %c0_14], %25 {strides = array<i32>} : memref<2x8x288xf32, #tpu.memory_space<vmem>>, vector<1x8x288xf32>,
    return
  }
  func.func @transform_0(%arg0: i32) -> (i32, i32, i32) {
    %c0_i32 = arith.constant 0 : i32
    %c0_i32_0 = arith.constant 0 : i32
    %c0_i32_1 = arith.constant 0 : i32
    return %arg0, %c0_i32, %c0_i32_0 : i32, i32, i32
  }
  func.func @transform_1(%arg0: i32) -> (i32, i32) {
    %c0_i32 = arith.constant 0 : i32
    %c0_i32_0 = arith.constant 0 : i32
    %c0_i32_1 = arith.constant 0 : i32
    return %c0_i32, %c0_i32_0 : i32, i32
  }
  func.func @transform_2(%arg0: i32) -> (i32, i32) {
    %c0_i32 = arith.constant 0 : i32
    %c0_i32_0 = arith.constant 0 : i32
    %c0_i32_1 = arith.constant 0 : i32
    return %c0_i32, %c0_i32_0 : i32, i32
  }
  func.func @transform_3(%arg0: i32) -> (i32, i32, i32) {
    %c0_i32 = arith.constant 0 : i32
    %c0_i32_0 = arith.constant 0 : i32
    %c0_i32_1 = arith.constant 0 : i32
    return %arg0, %c0_i32, %c0_i32_0 : i32, i32, i32
  }
}

</mosaic_0001>

<llo_original>
// kernel: mul.19
$region0: #{mul.19}
  #allocation0 [shape = 's32[1]{0}', space=sflag, size = 0x4, scoped, tag = 'scoped memory for mul.19']
  %s0 = inlined_call_operand.vmem [shape: f32[8,1], index: 0, kind: input, shape index: {}]
  %s1 = inlined_call_operand.vmem [shape: f32[8,1], index: 1, kind: input, shape index: {}]
  %s2 = inlined_call_operand.vmem [shape: f32[8,1], index: 2, kind: output, shape index: {}]
  %v3 = vld [vmem:[%s0] sm:$0xff]
  %v4 = vld [vmem:[%s1] sm:$0xff]
  %5 = xla_tuple %v3, %v4
  %6 = xla_tuple %5
  %v7 = vmul.f32 %v3, %v4
  %8 = xla_tuple %v7
  %9 = vst [vmem:[%s2] sm:$0xff] %v7

// kernel: pcb_activ_forward.3
$region0: #{pcb_activ_forward.3}
  #allocation0 [shape = 'u32[]', space=smem, size = 0x4, offset = 0x4, fixed_abs, tag = 'smem constant byte address 0x4 - core index']
  #allocation1 [shape = 'u32[144,128]{1,0:T(1,128)}', space=vmem, size = 0x12000, scoped, tag = 'internal scratch']
  %s0 = inlined_call_operand.vmem [shape: bf16[2,8,288], index: 0, kind: input, shape index: {}]
  %s1 = inlined_call_operand.vmem [shape: f32[8,1], index: 1, kind: input, shape index: {}]
  %s2 = inlined_call_operand.vmem [shape: f32[8,1], index: 2, kind: input, shape index: {}]
  %s3 = inlined_call_operand.vmem [shape: f32[2,8,288], index: 3, kind: output, shape index: {}]
  %s4 = sld [smem:[#allocation0]]
  $region22: #{pcb_activ_forward.3} parent=0
    _
  %s6 = ssub.s32 1, %s4
  %s7 = scalar_select 0, %s6, %s4
  // Predicated region
  $region2: #{pcb_activ_forward.3} parent=0 // pred_check
    _
  $region3: #{pcb_activ_forward.3} parent=0 // pred_check_branch
    %9 = sbr.rel (0) target = $region5
  $region4: #{pcb_activ_forward.3} parent=0 // pred_region
    _
  $region5: #{pcb_activ_forward.3} parent=0 // pred_fallthru
    _
  // Predicated region
  $region6: #{pcb_activ_forward.3} parent=0 // pred_check
    _
  $region7: #{pcb_activ_forward.3} parent=0 // pred_check_branch
    %11 = sbr.rel (0) target = $region9
  $region8: #{pcb_activ_forward.3} parent=0 // pred_region
    _
  $region9: #{pcb_activ_forward.3} parent=0 // pred_fallthru
    _
  // Predicated region
  $region10: #{pcb_activ_forward.3} parent=0 // pred_check
    _
  $region11: #{pcb_activ_forward.3} parent=0 // pred_check_branch
    %13 = sbr.rel (0) target = $region13
  $region12: #{pcb_activ_forward.3} parent=0 // pred_region
    _
  $region13: #{pcb_activ_forward.3} parent=0 // pred_fallthru
    _
  %v14 = vld [vmem:[%s1] sm:$0xff]
  %v15 = vld [vmem:[%s2] sm:$0xff]
  %v16 = vld [vmem:[%s0] sm:$0xff]
  %v17 = vld [vmem:[%s0 + $0x8] sm:$0xf]
  %v18 = vunpack.c.l.bf16 %v16
  %v19 = vunpack.c.h.bf16 %v16
  %v20 = vunpack.c.l.bf16 %v17
  %22 = vset.pattern.permute.xlu0 0
  %23 = vperm.xlu0 %22, %v14
  %v24 = vpop.permute.xlu0 %23
  %v26 = vmul.f32 %v18, %v24
  %v27 = vmul.f32 %v19, %v24
  %v28 = vmul.f32 %v20, %v24
  %30 = vset.pattern.permute.xlu0 0
  %31 = vperm.xlu0 %30, %v15
  %v32 = vpop.permute.xlu0 %31
  %v34 = vadd.f32 %v26, %v32
  %v35 = vadd.f32 %v27, %v32
  %v36 = vadd.f32 %v28, %v32
  %v37 = vmax.f32 %v34, 0.0
  %v38 = vmax.f32 %v35, 0.0
  %v39 = vmax.f32 %v36, 0.0
  %40 = vst [vmem:[%s3] sm:$0xff] %v37
  %41 = vst [vmem:[%s3 + $0x8] sm:$0xff] %v38
  %vm42 = vcmask 261120
  %43 = vst.msk [vmem:[%s3 + $0x10] sm:$0xff] %vm42, %v39
  %s44 = scalar_lea.vmem %s0, 12
  %v45 = vld [vmem:[%s44] sm:$0xff]
  %v46 = vld [vmem:[%s44 + $0x8] sm:$0xf]
  %v47 = vunpack.c.l.bf16 %v45
  %v48 = vunpack.c.h.bf16 %v45
  %v49 = vunpack.c.l.bf16 %v46
  %v50 = vmul.f32 %v47, %v24
  %v51 = vmul.f32 %v48, %v24
  %v52 = vmul.f32 %v49, %v24
  %v53 = vadd.f32 %v50, %v32
  %v54 = vadd.f32 %v51, %v32
  %v55 = vadd.f32 %v52, %v32
  %v56 = vmax.f32 %v53, 0.0
  %v57 = vmax.f32 %v54, 0.0
  %v58 = vmax.f32 %v55, 0.0
  %s59 = scalar_lea.vmem %s3, 24
  %60 = vst [vmem:[%s59] sm:$0xff] %v56
  %61 = vst [vmem:[%s59 + $0x8] sm:$0xff] %v57
  %62 = vst.msk [vmem:[%s59 + $0x10] sm:$0xff] %vm42, %v58
  // Predicated region
  $region14: #{pcb_activ_forward.3} parent=0 // pred_check
    _
  $region15: #{pcb_activ_forward.3} parent=0 // pred_check_branch
    %64 = sbr.rel (0) target = $region17
  $region16: #{pcb_activ_forward.3} parent=0 // pred_region
    _
  $region17: #{pcb_activ_forward.3} parent=0 // pred_fallthru
    _
  // Predicated region
  $region18: #{pcb_activ_forward.3} parent=0 // pred_check
    _
  $region19: #{pcb_activ_forward.3} parent=0 // pred_check_branch
    %66 = sbr.rel (0) target = $region21
  $region20: #{pcb_activ_forward.3} parent=0 // pred_region
    _
  $region21: #{pcb_activ_forward.3} parent=0 // pred_fallthru
    _

// kernel: pcb_activ_forward.2
$region0: #{pcb_activ_forward.2}
  #allocation0 [shape = 'u32[]', space=smem, size = 0x4, offset = 0x4, fixed_abs, tag = 'smem constant byte address 0x4 - core index']
  #allocation1 [shape = 'u32[144,128]{1,0:T(1,128)}', space=vmem, size = 0x12000, scoped, tag = 'internal scratch']
  #allocation2 [shape = 'bf16[72,288]{1,0:T(8,128)(2,1)}', space=vmem, size = 0xd800, scoped, tag = 'scratch operand']
  %s0 = inlined_call_operand.vmem [shape: bf16[2,4,326], index: 0, kind: input, shape index: {}]
  %s1 = inlined_call_operand.vmem [shape: bf16[2,4,326], index: 1, kind: input, shape index: {}]
  %s2 = inlined_call_operand.vmem [shape: bf16[9,72], index: 2, kind: input, shape index: {}]
  %s3 = inlined_call_operand.vmem [shape: f32[1,288], index: 3, kind: input, shape index: {}]
  %s4 = inlined_call_operand.vmem [shape: bf16[2,8,288], index: 4, kind: output, shape index: {0}]
  %s5 = inlined_call_operand.vmem [shape: f32[2,1,288], index: 5, kind: output, shape index: {1}]
  %s6 = inlined_call_operand.vmem [shape: f32[2,8,1], index: 6, kind: output, shape index: {2}]
  %s7 = inlined_call_operand.vmem [shape: f32[2,8,1], index: 7, kind: output, shape index: {3}]
  %8 = xla_tuple %s4, %s5, %s6, %s7
  %s9 = sld [smem:[#allocation0]]
  $region50: #{pcb_activ_forward.2} parent=0
    _
  %s11 = ssub.s32 1, %s9
  %s12 = scalar_select 0, %s11, %s9
  // Predicated region
  $region2: #{pcb_activ_forward.2} parent=0 // pred_check
    _
  $region3: #{pcb_activ_forward.2} parent=0 // pred_check_branch
    %14 = sbr.rel (0) target = $region5
  $region4: #{pcb_activ_forward.2} parent=0 // pred_region
    _
  $region5: #{pcb_activ_forward.2} parent=0 // pred_fallthru
    _
  // Predicated region
  $region6: #{pcb_activ_forward.2} parent=0 // pred_check
    _
  $region7: #{pcb_activ_forward.2} parent=0 // pred_check_branch
    %16 = sbr.rel (0) target = $region9
  $region8: #{pcb_activ_forward.2} parent=0 // pred_region
    _
  $region9: #{pcb_activ_forward.2} parent=0 // pred_fallthru
    _
  // Predicated region
  $region10: #{pcb_activ_forward.2} parent=0 // pred_check
    _
  $region11: #{pcb_activ_forward.2} parent=0 // pred_check_branch
    %18 = sbr.rel (0) target = $region13
  $region12: #{pcb_activ_forward.2} parent=0 // pred_region
    _
  $region13: #{pcb_activ_forward.2} parent=0 // pred_fallthru
    _
  // Predicated region
  $region14: #{pcb_activ_forward.2} parent=0 // pred_check
    _
  $region15: #{pcb_activ_forward.2} parent=0 // pred_check_branch
    %20 = sbr.rel (0) target = $region17
  $region16: #{pcb_activ_forward.2} parent=0 // pred_region
    _
  $region17: #{pcb_activ_forward.2} parent=0 // pred_fallthru
    _
  %v22 = vld [vmem:[%s3] sm:$0x7]
  %v23 = vld [vmem:[%s0] sm:$0x3f]
  %v24 = vld [vmem:[%s1] sm:$0x3f]
  %v25 = vmul.bf16 %v23, %v24
  %v27 = vcombine.high %v25, %v25
  %v29 = vunpack.c.l.s4 1983009808
  %v30 = vunpack.c.0.s8 %v29
  %v31 = vlaneseq
  %v32 = vshrl.u32 %v31, 7
  %v33 = vsub.s32 %v30, %v32
  %v34 = vrot.slane %v25, %v33
  %v36 = vunpack.c.l.s4 1983009808
  %v37 = vunpack.c.0.s8 %v36
  %v38 = vlaneseq
  %v39 = vshrl.u32 %v38, 7
  %v40 = vsub.s32 %v37, %v39
  %v41 = vrot.slane %v27, %v40
  %44 = vst [vmem:[#allocation2] sm:$0x33] %v34
  %vm45 = vcmask 254976
  %46 = vst.msk [vmem:[#allocation2 + $0x8] sm:$0x3] %vm45, %v41
  %v48 = vcombine.low %v24, %v24
  %v50 = vunpack.c.l.s4 1983009808
  %v51 = vunpack.c.0.s8 %v50
  %v52 = vlaneseq
  %v53 = vshrl.u32 %v52, 7
  %v54 = vsub.s32 %v51, %v53
  %v55 = vrot.slane %v48, %v54
  %v57 = vunpack.c.l.s4 1983009808
  %v58 = vunpack.c.0.s8 %v57
  %v59 = vlaneseq
  %v60 = vshrl.u32 %v59, 7
  %v61 = vsub.s32 %v58, %v60
  %v62 = vrot.slane %v24, %v61
  %65 = vst [vmem:[#allocation2 + $0x30] sm:$0xcc] %v55
  %vm66 = vcmask 257026
  %67 = vst.msk [vmem:[#allocation2 + $0x38] sm:$0xc] %vm66, %v62
  %v68 = vcombine.low %v25, %v25
  %v70 = vunpack.c.l.s4 1983009808
  %v71 = vunpack.c.0.s8 %v70
  %v72 = vlaneseq
  %v73 = vshrl.u32 %v72, 7
  %v74 = vsub.s32 %v71, %v73
  %v75 = vrot.slane %v68, %v74
  %76 = vrot.lane.b32.xlu0 %v75, 127
  %v77 = vpop.permute.xlu0 %76
  %78 = vrot.lane.b32.xlu0 %v34, 127
  %v79 = vpop.permute.xlu0 %78
  %v80 = vrot.slane %v77, 4
  %v81 = vrot.slane %v79, 4
  %vm82 = vcmask 1043456
  %v83 = vsel %vm82, %v80, %v81
  %vm84 = vcmask 1039360
  %v85 = vsel %vm84, %v77, %v83
  %88 = vst [vmem:[#allocation2] sm:$0xcc] %v85
  %89 = vst.msk [vmem:[#allocation2 + $0x8] sm:$0xc] %vm66, %v79
  %v90 = vcombine.high %v24, %v24
  %v92 = vunpack.c.l.s4 1983009808
  %v93 = vunpack.c.0.s8 %v92
  %v94 = vlaneseq
  %v95 = vshrl.u32 %v94, 7
  %v96 = vsub.s32 %v93, %v95
  %v97 = vrot.slane %v90, %v96
  %98 = vrot.lane.b32.xlu0 %v62, 127
  %v99 = vpop.permute.xlu0 %98
  %100 = vrot.lane.b32.xlu0 %v97, 127
  %v101 = vpop.permute.xlu0 %100
  %v102 = vrot.slane %v99, 4
  %v103 = vrot.slane %v101, 4
  %v104 = vsel %vm82, %v102, %v103
  %v105 = vsel %vm84, %v99, %v104
  %108 = vst [vmem:[#allocation2 + $0x3c] sm:$0x33] %v105
  %109 = vst.msk [vmem:[#allocation2 + $0x44] sm:$0x3] %vm45, %v101
  %110 = vrot.lane.b32.xlu0 %v34, 126
  %v111 = vpop.permute.xlu0 %110
  %112 = vrot.lane.b32.xlu0 %v41, 126
  %v113 = vpop.permute.xlu0 %112
  %v114 = vrot.slane %v111, 4
  %v115 = vrot.slane %v113, 4
  %v116 = vsel %vm82, %v114, %v115
  %vm117 = vcmask 1031168
  %v118 = vsel %vm117, %v111, %v116
  %121 = vst [vmem:[#allocation2 + $0xc] sm:$0x33] %v118
  %122 = vst.msk [vmem:[#allocation2 + $0x14] sm:$0x3] %vm45, %v113
  %123 = vrot.lane.b32.xlu0 %v55, 126
  %v124 = vpop.permute.xlu0 %123
  %125 = vrot.lane.b32.xlu0 %v62, 126
  %v126 = vpop.permute.xlu0 %125
  %v127 = vrot.slane %v124, 4
  %v128 = vrot.slane %v126, 4
  %v129 = vsel %vm82, %v127, %v128
  %v130 = vsel %vm117, %v124, %v129
  %133 = vst [vmem:[#allocation2 + $0x3c] sm:$0xcc] %v130
  %134 = vst.msk [vmem:[#allocation2 + $0x44] sm:$0xc] %vm66, %v126
  %135 = vrot.lane.b32.xlu0 %v75, 110
  %v136 = vpop.permute.xlu0 %135
  %137 = vrot.lane.b32.xlu0 %v34, 110
  %v138 = vpop.permute.xlu0 %137
  %v139 = vrot.slane %v136, 4
  %v140 = vrot.slane %v138, 4
  %v141 = vsel %vm82, %v139, %v140
  %vm142 = vcmask 900096
  %v143 = vsel %vm142, %v136, %v141
  %146 = vst [vmem:[#allocation2 + $0xc] sm:$0xcc] %v143
  %147 = vst.msk [vmem:[#allocation2 + $0x14] sm:$0xc] %vm66, %v138
  %148 = vrot.lane.b32.xlu0 %v62, 110
  %v149 = vpop.permute.xlu0 %148
  %150 = vrot.lane.b32.xlu0 %v97, 110
  %v151 = vpop.permute.xlu0 %150
  %v152 = vrot.slane %v149, 4
  %v153 = vrot.slane %v151, 4
  %v154 = vsel %vm82, %v152, %v153
  %v155 = vsel %vm142, %v149, %v154
  %158 = vst [vmem:[#allocation2 + $0x48] sm:$0x33] %v155
  %159 = vst.msk [vmem:[#allocation2 + $0x50] sm:$0x3] %vm45, %v151
  %160 = vrot.lane.b32.xlu0 %v34, 109
  %v161 = vpop.permute.xlu0 %160
  %162 = vrot.lane.b32.xlu0 %v41, 109
  %v163 = vpop.permute.xlu0 %162
  %v164 = vrot.slane %v161, 4
  %v165 = vrot.slane %v163, 4
  %v166 = vsel %vm82, %v164, %v165
  %vm167 = vcmask 891904
  %v168 = vsel %vm167, %v161, %v166
  %171 = vst [vmem:[#allocation2 + $0x18] sm:$0x33] %v168
  %172 = vst.msk [vmem:[#allocation2 + $0x20] sm:$0x3] %vm45, %v163
  %173 = vrot.lane.b32.xlu0 %v55, 109
  %v174 = vpop.permute.xlu0 %173
  %175 = vrot.lane.b32.xlu0 %v62, 109
  %v176 = vpop.permute.xlu0 %175
  %v177 = vrot.slane %v174, 4
  %v178 = vrot.slane %v176, 4
  %v179 = vsel %vm82, %v177, %v178
  %v180 = vsel %vm167, %v174, %v179
  %183 = vst [vmem:[#allocation2 + $0x48] sm:$0xcc] %v180
  %184 = vst.msk [vmem:[#allocation2 + $0x50] sm:$0xc] %vm66, %v176
  %185 = vrot.lane.b32.xlu0 %v75, 108
  %v186 = vpop.permute.xlu0 %185
  %187 = vrot.lane.b32.xlu0 %v34, 108
  %v188 = vpop.permute.xlu0 %187
  %v189 = vrot.slane %v186, 4
  %v190 = vrot.slane %v188, 4
  %v191 = vsel %vm82, %v189, %v190
  %vm192 = vcmask 883712
  %v193 = vsel %vm192, %v186, %v191
  %196 = vst [vmem:[#allocation2 + $0x18] sm:$0xcc] %v193
  %197 = vst.msk [vmem:[#allocation2 + $0x20] sm:$0xc] %vm66, %v188
  %198 = vrot.lane.b32.xlu0 %v62, 108
  %v199 = vpop.permute.xlu0 %198
  %200 = vrot.lane.b32.xlu0 %v97, 108
  %v201 = vpop.permute.xlu0 %200
  %v202 = vrot.slane %v199, 4
  %v203 = vrot.slane %v201, 4
  %v204 = vsel %vm82, %v202, %v203
  %v205 = vsel %vm192, %v199, %v204
  %208 = vst [vmem:[#allocation2 + $0x54] sm:$0x33] %v205
  %209 = vst.msk [vmem:[#allocation2 + $0x5c] sm:$0x3] %vm45, %v201
  %210 = vrot.lane.b32.xlu0 %v34, 92
  %v211 = vpop.permute.xlu0 %210
  %212 = vrot.lane.b32.xlu0 %v41, 92
  %v213 = vpop.permute.xlu0 %212
  %v214 = vrot.slane %v211, 4
  %v215 = vrot.slane %v213, 4
  %v216 = vsel %vm82, %v214, %v215
  %vm217 = vcmask 752640
  %v218 = vsel %vm217, %v211, %v216
  %221 = vst [vmem:[#allocation2 + $0x24] sm:$0x33] %v218
  %222 = vst.msk [vmem:[#allocation2 + $0x2c] sm:$0x3] %vm45, %v213
  %223 = vrot.lane.b32.xlu0 %v55, 92
  %v224 = vpop.permute.xlu0 %223
  %225 = vrot.lane.b32.xlu0 %v62, 92
  %v226 = vpop.permute.xlu0 %225
  %v227 = vrot.slane %v224, 4
  %v228 = vrot.slane %v226, 4
  %v229 = vsel %vm82, %v227, %v228
  %v230 = vsel %vm217, %v224, %v229
  %233 = vst [vmem:[#allocation2 + $0x54] sm:$0xcc] %v230
  %234 = vst.msk [vmem:[#allocation2 + $0x5c] sm:$0xc] %vm66, %v226
  %235 = vrot.lane.b32.xlu0 %v75, 91
  %v236 = vpop.permute.xlu0 %235
  %237 = vrot.lane.b32.xlu0 %v34, 91
  %v238 = vpop.permute.xlu0 %237
  %v239 = vrot.slane %v236, 4
  %v240 = vrot.slane %v238, 4
  %v241 = vsel %vm82, %v239, %v240
  %vm242 = vcmask 744448
  %v243 = vsel %vm242, %v236, %v241
  %246 = vst [vmem:[#allocation2 + $0x24] sm:$0xcc] %v243
  %247 = vst.msk [vmem:[#allocation2 + $0x2c] sm:$0xc] %vm66, %v238
  %248 = vrot.lane.b32.xlu0 %v62, 91
  %v249 = vpop.permute.xlu0 %248
  %250 = vrot.lane.b32.xlu0 %v97, 91
  %v251 = vpop.permute.xlu0 %250
  %v252 = vrot.slane %v249, 4
  %v253 = vrot.slane %v251, 4
  %v254 = vsel %vm82, %v252, %v253
  %v255 = vsel %vm242, %v249, %v254
  %258 = vst [vmem:[#allocation2 + $0x60] sm:$0x33] %v255
  %259 = vst.msk [vmem:[#allocation2 + $0x68] sm:$0x3] %vm45, %v251
  %260 = vrot.lane.b32.xlu0 %v34, 90
  %v261 = vpop.permute.xlu0 %260
  %262 = vrot.lane.b32.xlu0 %v41, 90
  %v263 = vpop.permute.xlu0 %262
  %v264 = vrot.slane %v261, 4
  %v265 = vrot.slane %v263, 4
  %v266 = vsel %vm82, %v264, %v265
  %vm267 = vcmask 736256
  %v268 = vsel %vm267, %v261, %v266
  %271 = vst [vmem:[#allocation2 + $0x30] sm:$0x33] %v268
  %272 = vst.msk [vmem:[#allocation2 + $0x38] sm:$0x3] %vm45, %v263
  %273 = vrot.lane.b32.xlu0 %v55, 90
  %v274 = vpop.permute.xlu0 %273
  %275 = vrot.lane.b32.xlu0 %v62, 90
  %v276 = vpop.permute.xlu0 %275
  %v277 = vrot.slane %v274, 4
  %v278 = vrot.slane %v276, 4
  %v279 = vsel %vm82, %v277, %v278
  %v280 = vsel %vm267, %v274, %v279
  %283 = vst [vmem:[#allocation2 + $0x60] sm:$0xcc] %v280
  %284 = vst.msk [vmem:[#allocation2 + $0x68] sm:$0xc] %vm66, %v276
  %v285 = vld [vmem:[%s2] sm:$0xf]
  %v286 = vld [vmem:[%s2 + $0x4] sm:$0x1]
  %v287 = vld [vmem:[#allocation2] sm:$0xff]
  %v288 = vld [vmem:[#allocation2 + $0x8] sm:$0xf]
  %v289 = vld [vmem:[#allocation2 + $0xc] sm:$0xff]
  %v290 = vld [vmem:[#allocation2 + $0x14] sm:$0xf]
  %v291 = vld [vmem:[#allocation2 + $0x18] sm:$0xff]
  %v292 = vld [vmem:[#allocation2 + $0x20] sm:$0xf]
  %v293 = vld [vmem:[#allocation2 + $0x24] sm:$0xff]
  %v294 = vld [vmem:[#allocation2 + $0x2c] sm:$0xf]
  %v295 = vld [vmem:[#allocation2 + $0x30] sm:$0xff]
  %v296 = vld [vmem:[#allocation2 + $0x38] sm:$0xf]
  %v297 = vld [vmem:[#allocation2 + $0x3c] sm:$0xff]
  %v298 = vld [vmem:[#allocation2 + $0x44] sm:$0xf]
  %v299 = vld [vmem:[#allocation2 + $0x48] sm:$0xff]
  %v300 = vld [vmem:[#allocation2 + $0x50] sm:$0xf]
  %v301 = vld [vmem:[#allocation2 + $0x54] sm:$0xff]
  %v302 = vld [vmem:[#allocation2 + $0x5c] sm:$0xf]
  %v303 = vld [vmem:[#allocation2 + $0x60] sm:$0xff]
  %v304 = vld [vmem:[#allocation2 + $0x68] sm:$0xf]
  %v307 = vunpack.c.l.b16 %v285
  %v308 = vunpack.c.l.b16 %v286
  %v309 = vpack.c.b16 %v308, %v307
  %v328 = vunpack.c.l.b16 %v287
  %v329 = vunpack.c.h.b16 %v287
  %v330 = vunpack.c.l.b16 %v288
  %v331 = vunpack.c.l.b16 %v289
  %v332 = vunpack.c.h.b16 %v289
  %v333 = vunpack.c.l.b16 %v290
  %v334 = vunpack.c.l.b16 %v291
  %v335 = vunpack.c.h.b16 %v291
  %v336 = vunpack.c.l.b16 %v292
  %v337 = vunpack.c.l.b16 %v293
  %v338 = vunpack.c.h.b16 %v293
  %v339 = vunpack.c.l.b16 %v294
  %v340 = vunpack.c.l.b16 %v295
  %v341 = vunpack.c.h.b16 %v295
  %v342 = vunpack.c.l.b16 %v296
  %v343 = vunpack.c.l.b16 %v297
  %v344 = vunpack.c.h.b16 %v297
  %v345 = vunpack.c.l.b16 %v298
  %v346 = vunpack.c.l.b16 %v299
  %v347 = vunpack.c.h.b16 %v299
  %v348 = vunpack.c.l.b16 %v300
  %v349 = vunpack.c.l.b16 %v301
  %v350 = vunpack.c.h.b16 %v301
  %v351 = vunpack.c.l.b16 %v302
  %v352 = vunpack.c.l.b16 %v303
  %v353 = vunpack.c.h.b16 %v303
  %v354 = vunpack.c.l.b16 %v304
  %v355 = vpack.c.b16 %v331, %v328
  %v356 = vpack.c.b16 %v332, %v329
  %v357 = vpack.c.b16 %v333, %v330
  %v358 = vpack.c.b16 %v337, %v334
  %v359 = vpack.c.b16 %v338, %v335
  %v360 = vpack.c.b16 %v339, %v336
  %v361 = vpack.c.b16 %v343, %v340
  %v362 = vpack.c.b16 %v344, %v341
  %v363 = vpack.c.b16 %v345, %v342
  %v364 = vpack.c.b16 %v349, %v346
  %v365 = vpack.c.b16 %v350, %v347
  %v366 = vpack.c.b16 %v351, %v348
  %v367 = vpack.c.b16 %v352, %v352
  %v368 = vpack.c.b16 %v353, %v353
  %v369 = vpack.c.b16 %v354, %v354
  %vm382 = vcmask 588800
  %v384 = vsel %vm382, %v309, 0
  %vm386 = vcmask 1043456
  %v388 = vsel %vm386, %v367, 0
  %v391 = vsel %vm386, %v368, 0
  %v394 = vsel %vm386, %v369, 0
  %396 = vmatprep.subr.bf16.mxu0 %v356
  %397 = vmatpush1.bf16.msra.mxu0 %v355
  %398 = vmatprep.subr.bf16.mxu0 %v359
  %399 = vmatpush1.bf16.msra.mxu0 %v358
  %400 = vmatprep.subr.bf16.mxu0 %v362
  %401 = vmatpush1.bf16.msra.mxu0 %v361
  %402 = vmatprep.subr.bf16.mxu0 %v365
  %403 = vmatpush1.bf16.msra.mxu0 %v364
  %404 = vmatprep.subr.bf16.mxu0 %v391
  %405 = vmatpush1.bf16.msra.mxu0 %v388
  %406 = vmatprep.subr.bf16.mxu0 0
  %407 = vmatpush1.bf16.msra.mxu0 0
  %408 = vmatprep.subr.bf16.mxu0 0
  %409 = vmatpush1.bf16.msra.mxu0 0
  %410 = vmatprep.subr.bf16.mxu0 0
  %411 = vmatpush1.bf16.msra.mxu0 0
  %412 = vmatprep.subr.bf16.mxu0 0
  %413 = vmatpush1.bf16.msra.mxu0 0
  %414 = vmatprep.subr.bf16.mxu0 0
  %415 = vmatpush1.bf16.msra.mxu0 0
  %416 = vmatprep.subr.bf16.mxu0 0
  %417 = vmatpush1.bf16.msra.mxu0 0
  %418 = vmatprep.subr.bf16.mxu0 0
  %419 = vmatpush1.bf16.msra.mxu0 0
  %420 = vmatprep.subr.bf16.mxu0 0
  %421 = vmatpush1.bf16.msra.mxu0 0
  %422 = vmatprep.subr.bf16.mxu0 0
  %423 = vmatpush1.bf16.msra.mxu0 0
  %424 = vmatprep.subr.bf16.mxu0 0
  %425 = vmatpush1.bf16.msra.mxu0 0
  %426 = vmatprep.subr.bf16.mxu0 0
  %427 = vmatpush1.bf16.msra.mxu0 0
  %428 = vmatprep.mubr.bf16.mxu0 0
  %429 = vmatmul.mubr.bf16.gmra.mrb[0].mxu0 %v384
  %v430 = vpop.f32.mrb[0].mxu0
  %v431 = vadd.f32 0.0, %v430
  %v432 = vpop.f32.mrb[0].mxu0
  %v433 = vadd.f32 0.0, %v432
  %v434 = vpop.f32.mrb[0].mxu0
  %v435 = vadd.f32 0.0, %v434
  %v436 = vpop.f32.mrb[0].mxu0
  %v437 = vadd.f32 0.0, %v436
  %438 = vdwg.mxu0
  %439 = vmatprep.subr.bf16.mxu0 0
  %440 = vmatpush1.bf16.msra.mxu0 %v357
  %441 = vmatprep.subr.bf16.mxu0 0
  %442 = vmatpush1.bf16.msra.mxu0 %v360
  %443 = vmatprep.subr.bf16.mxu0 0
  %444 = vmatpush1.bf16.msra.mxu0 %v363
  %445 = vmatprep.subr.bf16.mxu0 0
  %446 = vmatpush1.bf16.msra.mxu0 %v366
  %447 = vmatprep.subr.bf16.mxu0 0
  %448 = vmatpush1.bf16.msra.mxu0 %v394
  %449 = vmatprep.subr.bf16.mxu0 0
  %450 = vmatpush1.bf16.msra.mxu0 0
  %451 = vmatprep.subr.bf16.mxu0 0
  %452 = vmatpush1.bf16.msra.mxu0 0
  %453 = vmatprep.subr.bf16.mxu0 0
  %454 = vmatpush1.bf16.msra.mxu0 0
  %455 = vmatprep.subr.bf16.mxu0 0
  %456 = vmatpush1.bf16.msra.mxu0 0
  %457 = vmatprep.subr.bf16.mxu0 0
  %458 = vmatpush1.bf16.msra.mxu0 0
  %459 = vmatprep.subr.bf16.mxu0 0
  %460 = vmatpush1.bf16.msra.mxu0 0
  %461 = vmatprep.subr.bf16.mxu0 0
  %462 = vmatpush1.bf16.msra.mxu0 0
  %463 = vmatprep.subr.bf16.mxu0 0
  %464 = vmatpush1.bf16.msra.mxu0 0
  %465 = vmatprep.subr.bf16.mxu0 0
  %466 = vmatpush1.bf16.msra.mxu0 0
  %467 = vmatprep.subr.bf16.mxu0 0
  %468 = vmatpush1.bf16.msra.mxu0 0
  %469 = vmatprep.subr.bf16.mxu0 0
  %470 = vmatpush1.bf16.msra.mxu0 0
  %471 = vmatprep.mubr.bf16.mxu0 0
  %472 = vmatmul.mubr.bf16.gmra.mrb[0].mxu0 %v384
  %v473 = vpop.f32.mrb[0].mxu0
  %v474 = vadd.f32 0.0, %v473
  %v475 = vpop.f32.mrb[0].mxu0
  %v476 = vpop.f32.mrb[0].mxu0
  %v477 = vadd.f32 0.0, %v476
  %v478 = vpop.f32.mrb[0].mxu0
  %479 = vdwg.mxu0
  %vm480 = vcmp.eq.f32.partialorder %v435, 0.0
  %vm481 = vcmp.eq.f32.partialorder %v437, 0.0
  %vm482 = vcmp.eq.f32.partialorder %v477, 0.0
  %v483 = vsel %vm480, 1.0, %v435
  %v484 = vsel %vm481, 1.0, %v437
  %v485 = vsel %vm482, 1.0, %v477
  %v486 = vrcp.pop %v483
  %v487 = vmul.f32 1.0, %v486
  %v488 = vrcp.pop %v484
  %v489 = vmul.f32 1.0, %v488
  %v490 = vrcp.pop %v485
  %v491 = vmul.f32 1.0, %v490
  %vm492 = vmxor %vm480, 1
  %vm493 = vmxor %vm481, 1
  %vm494 = vmxor %vm482, 1
  %vm495 = vcmp.gt.f32.partialorder %v22, 0.5
  %v496 = vsel %vm495, 1, 0
  %v497 = vlaneseq
  %v498 = vshrl.u32 %v497, 7
  %v499 = vsub.s32 0, %v498
  %v500 = vrot.slane %v496, %v499
  %v501 = vlaneseq
  %v502 = vshrl.u32 %v501, 7
  %v503 = vsub.s32 1, %v502
  %v504 = vrot.slane %v496, %v503
  %v505 = vlaneseq
  %v506 = vshrl.u32 %v505, 7
  %v507 = vsub.s32 2, %v506
  %v508 = vrot.slane %v496, %v507
  %vm509 = vcmp.ne.s32.totalorder %v500, 0
  %vm510 = vcmp.ne.s32.totalorder %v504, 0
  %vm511 = vcmp.ne.s32.totalorder %v508, 0
  %vm512 = vmand %vm492, %vm509
  %vm513 = vmand %vm493, %vm510
  %vm514 = vmand %vm494, %vm511
  %v515 = vlaneseq
  %v516 = vshrl.u32 %v515, 7
  %v517 = vsub.s32 0, %v516
  %v518 = vrot.slane %v487, %v517
  %v519 = vlaneseq
  %v520 = vshrl.u32 %v519, 7
  %v521 = vsub.s32 0, %v520
  %v522 = vrot.slane %v489, %v521
  %v523 = vlaneseq
  %v524 = vshrl.u32 %v523, 7
  %v525 = vsub.s32 0, %v524
  %v526 = vrot.slane %v491, %v525
  %v527 = vmul.f32 %v431, %v518
  %v528 = vmul.f32 %v433, %v522
  %v529 = vmul.f32 %v474, %v526
  %v530 = vsel %vm512, 1, 0
  %v531 = vsel %vm513, 1, 0
  %v532 = vsel %vm514, 1, 0
  %v533 = vlaneseq
  %v534 = vshrl.u32 %v533, 7
  %v535 = vsub.s32 0, %v534
  %v536 = vrot.slane %v530, %v535
  %v537 = vlaneseq
  %v538 = vshrl.u32 %v537, 7
  %v539 = vsub.s32 0, %v538
  %v540 = vrot.slane %v531, %v539
  %v541 = vlaneseq
  %v542 = vshrl.u32 %v541, 7
  %v543 = vsub.s32 0, %v542
  %v544 = vrot.slane %v532, %v543
  %vm545 = vcmp.eq.s32.totalorder %v536, 1
  %vm546 = vcmp.eq.s32.totalorder %v540, 1
  %vm547 = vcmp.eq.s32.totalorder %v544, 1
  %v548 = vsel %vm545, %v527, 0.0
  %v549 = vsel %vm546, %v528, 0.0
  %v550 = vsel %vm547, %v529, 0.0
  %v551 = vpack.c.bf16 %v548, %v548
  %v552 = vpack.c.bf16 %v549, %v549
  %v553 = vpack.c.bf16 %v550, %v550
  %v557 = vunpack.c.l.b16 %v551
  %v558 = vunpack.c.l.b16 %v552
  %v559 = vunpack.c.l.b16 %v553
  %v560 = vpack.c.b16 %v558, %v557
  %v561 = vpack.c.b16 %v559, %v559
  %564 = vst [vmem:[%s4] sm:$0xff] %v560
  %vm565 = vcmask 257024
  %566 = vst.msk [vmem:[%s4 + $0x8] sm:$0xf] %vm565, %v561
  %v567 = vcvt.s32.f32 %v530
  %v568 = vcvt.s32.f32 %v531
  %v569 = vcvt.s32.f32 %v532
  %v573 = vcombine.low %v567, %v568
  %v575 = vunpack.c.l.s4 1966171168
  %v576 = vunpack.c.0.s8 %v575
  %v577 = vlaneseq
  %v578 = vshrl.u32 %v577, 7
  %v579 = vsub.s32 %v576, %v578
  %v580 = vrot.slane %v573, %v579
  %v582 = vunpack.c.l.s4 1966171168
  %v583 = vunpack.c.0.s8 %v582
  %v584 = vlaneseq
  %v585 = vshrl.u32 %v584, 7
  %v586 = vsub.s32 %v583, %v585
  %v587 = vrot.slane %v569, %v586
  %v588 = vcombine.low %v580, %v587
  %v590 = vunpack.c.l.s4 1966171168
  %v591 = vunpack.c.0.s8 %v590
  %v592 = vlaneseq
  %v593 = vshrl.u32 %v592, 7
  %v594 = vsub.s32 %v591, %v593
  %v595 = vrot.slane %v588, %v594
  %v597 = vlaneseq
  %vm598 = vcmp.ge.s32.totalorder %v597, 0
  %vm599 = vcmp.lt.s32.totalorder %v597, 288
  %vm600 = vmand %vm598, %vm599
  %601 = vst.msk [vmem:[%s5] sm:$0x7] %vm600, %v595
  %v602 = vadd.f32 %v548, %v549
  %vm603 = vcmask 261120
  %v604 = vsel %vm603, %v550, 0.0
  %v605 = vadd.f32 %v602, %v604
  %606 = vadd.xlane.f32.xlu0 %v605
  %v607 = vpop.xlane.xlu0 %606
  %vm608 = vcmask 7168
  %609 = vst.msk [vmem:[%s6] sm:$0xff] %vm608, %v607
  %v610 = vmul.f32 %v548, %v548
  %v611 = vmul.f32 %v549, %v549
  %v612 = vmul.f32 %v550, %v550
  %v613 = vadd.f32 %v610, %v611
  %v614 = vsel %vm603, %v612, 0.0
  %v615 = vadd.f32 %v613, %v614
  %616 = vadd.xlane.f32.xlu0 %v615
  %v617 = vpop.xlane.xlu0 %616
  %618 = vst.msk [vmem:[%s7] sm:$0xff] %vm608, %v617
  %s619 = scalar_lea.vmem %s0, 6
  %v620 = vld [vmem:[%s619] sm:$0x3f]
  %s621 = scalar_lea.vmem %s1, 6
  %v622 = vld [vmem:[%s621] sm:$0x3f]
  %v623 = vmul.bf16 %v620, %v622
  %v625 = vcombine.high %v623, %v623
  %v627 = vunpack.c.l.s4 1983009808
  %v628 = vunpack.c.0.s8 %v627
  %v629 = vlaneseq
  %v630 = vshrl.u32 %v629, 7
  %v631 = vsub.s32 %v628, %v630
  %v632 = vrot.slane %v623, %v631
  %v634 = vunpack.c.l.s4 1983009808
  %v635 = vunpack.c.0.s8 %v634
  %v636 = vlaneseq
  %v637 = vshrl.u32 %v636, 7
  %v638 = vsub.s32 %v635, %v637
  %v639 = vrot.slane %v625, %v638
  %642 = vst [vmem:[#allocation2] sm:$0x33] %v632
  %643 = vst.msk [vmem:[#allocation2 + $0x8] sm:$0x3] %vm45, %v639
  %v645 = vcombine.low %v622, %v622
  %v647 = vunpack.c.l.s4 1983009808
  %v648 = vunpack.c.0.s8 %v647
  %v649 = vlaneseq
  %v650 = vshrl.u32 %v649, 7
  %v651 = vsub.s32 %v648, %v650
  %v652 = vrot.slane %v645, %v651
  %v654 = vunpack.c.l.s4 1983009808
  %v655 = vunpack.c.0.s8 %v654
  %v656 = vlaneseq
  %v657 = vshrl.u32 %v656, 7
  %v658 = vsub.s32 %v655, %v657
  %v659 = vrot.slane %v622, %v658
  %662 = vst [vmem:[#allocation2 + $0x30] sm:$0xcc] %v652
  %663 = vst.msk [vmem:[#allocation2 + $0x38] sm:$0xc] %vm66, %v659
  %v664 = vcombine.low %v623, %v623
  %v666 = vunpack.c.l.s4 1983009808
  %v667 = vunpack.c.0.s8 %v666
  %v668 = vlaneseq
  %v669 = vshrl.u32 %v668, 7
  %v670 = vsub.s32 %v667, %v669
  %v671 = vrot.slane %v664, %v670
  %672 = vrot.lane.b32.xlu0 %v671, 127
  %v673 = vpop.permute.xlu0 %672
  %674 = vrot.lane.b32.xlu0 %v632, 127
  %v675 = vpop.permute.xlu0 %674
  %v676 = vrot.slane %v673, 4
  %v677 = vrot.slane %v675, 4
  %v678 = vsel %vm82, %v676, %v677
  %v679 = vsel %vm84, %v673, %v678
  %682 = vst [vmem:[#allocation2] sm:$0xcc] %v679
  %683 = vst.msk [vmem:[#allocation2 + $0x8] sm:$0xc] %vm66, %v675
  %v684 = vcombine.high %v622, %v622
  %v686 = vunpack.c.l.s4 1983009808
  %v687 = vunpack.c.0.s8 %v686
  %v688 = vlaneseq
  %v689 = vshrl.u32 %v688, 7
  %v690 = vsub.s32 %v687, %v689
  %v691 = vrot.slane %v684, %v690
  %692 = vrot.lane.b32.xlu0 %v659, 127
  %v693 = vpop.permute.xlu0 %692
  %694 = vrot.lane.b32.xlu0 %v691, 127
  %v695 = vpop.permute.xlu0 %694
  %v696 = vrot.slane %v693, 4
  %v697 = vrot.slane %v695, 4
  %v698 = vsel %vm82, %v696, %v697
  %v699 = vsel %vm84, %v693, %v698
  %702 = vst [vmem:[#allocation2 + $0x3c] sm:$0x33] %v699
  %703 = vst.msk [vmem:[#allocation2 + $0x44] sm:$0x3] %vm45, %v695
  %704 = vrot.lane.b32.xlu0 %v632, 126
  %v705 = vpop.permute.xlu0 %704
  %706 = vrot.lane.b32.xlu0 %v639, 126
  %v707 = vpop.permute.xlu0 %706
  %v708 = vrot.slane %v705, 4
  %v709 = vrot.slane %v707, 4
  %v710 = vsel %vm82, %v708, %v709
  %v711 = vsel %vm117, %v705, %v710
  %714 = vst [vmem:[#allocation2 + $0xc] sm:$0x33] %v711
  %715 = vst.msk [vmem:[#allocation2 + $0x14] sm:$0x3] %vm45, %v707
  %716 = vrot.lane.b32.xlu0 %v652, 126
  %v717 = vpop.permute.xlu0 %716
  %718 = vrot.lane.b32.xlu0 %v659, 126
  %v719 = vpop.permute.xlu0 %718
  %v720 = vrot.slane %v717, 4
  %v721 = vrot.slane %v719, 4
  %v722 = vsel %vm82, %v720, %v721
  %v723 = vsel %vm117, %v717, %v722
  %726 = vst [vmem:[#allocation2 + $0x3c] sm:$0xcc] %v723
  %727 = vst.msk [vmem:[#allocation2 + $0x44] sm:$0xc] %vm66, %v719
  %728 = vrot.lane.b32.xlu0 %v671, 110
  %v729 = vpop.permute.xlu0 %728
  %730 = vrot.lane.b32.xlu0 %v632, 110
  %v731 = vpop.permute.xlu0 %730
  %v732 = vrot.slane %v729, 4
  %v733 = vrot.slane %v731, 4
  %v734 = vsel %vm82, %v732, %v733
  %v735 = vsel %vm142, %v729, %v734
  %738 = vst [vmem:[#allocation2 + $0xc] sm:$0xcc] %v735
  %739 = vst.msk [vmem:[#allocation2 + $0x14] sm:$0xc] %vm66, %v731
  %740 = vrot.lane.b32.xlu0 %v659, 110
  %v741 = vpop.permute.xlu0 %740
  %742 = vrot.lane.b32.xlu0 %v691, 110
  %v743 = vpop.permute.xlu0 %742
  %v744 = vrot.slane %v741, 4
  %v745 = vrot.slane %v743, 4
  %v746 = vsel %vm82, %v744, %v745
  %v747 = vsel %vm142, %v741, %v746
  %750 = vst [vmem:[#allocation2 + $0x48] sm:$0x33] %v747
  %751 = vst.msk [vmem:[#allocation2 + $0x50] sm:$0x3] %vm45, %v743
  %752 = vrot.lane.b32.xlu0 %v632, 109
  %v753 = vpop.permute.xlu0 %752
  %754 = vrot.lane.b32.xlu0 %v639, 109
  %v755 = vpop.permute.xlu0 %754
  %v756 = vrot.slane %v753, 4
  %v757 = vrot.slane %v755, 4
  %v758 = vsel %vm82, %v756, %v757
  %v759 = vsel %vm167, %v753, %v758
  %762 = vst [vmem:[#allocation2 + $0x18] sm:$0x33] %v759
  %763 = vst.msk [vmem:[#allocation2 + $0x20] sm:$0x3] %vm45, %v755
  %764 = vrot.lane.b32.xlu0 %v652, 109
  %v765 = vpop.permute.xlu0 %764
  %766 = vrot.lane.b32.xlu0 %v659, 109
  %v767 = vpop.permute.xlu0 %766
  %v768 = vrot.slane %v765, 4
  %v769 = vrot.slane %v767, 4
  %v770 = vsel %vm82, %v768, %v769
  %v771 = vsel %vm167, %v765, %v770
  %774 = vst [vmem:[#allocation2 + $0x48] sm:$0xcc] %v771
  %775 = vst.msk [vmem:[#allocation2 + $0x50] sm:$0xc] %vm66, %v767
  %776 = vrot.lane.b32.xlu0 %v671, 108
  %v777 = vpop.permute.xlu0 %776
  %778 = vrot.lane.b32.xlu0 %v632, 108
  %v779 = vpop.permute.xlu0 %778
  %v780 = vrot.slane %v777, 4
  %v781 = vrot.slane %v779, 4
  %v782 = vsel %vm82, %v780, %v781
  %v783 = vsel %vm192, %v777, %v782
  %786 = vst [vmem:[#allocation2 + $0x18] sm:$0xcc] %v783
  %787 = vst.msk [vmem:[#allocation2 + $0x20] sm:$0xc] %vm66, %v779
  %788 = vrot.lane.b32.xlu0 %v659, 108
  %v789 = vpop.permute.xlu0 %788
  %790 = vrot.lane.b32.xlu0 %v691, 108
  %v791 = vpop.permute.xlu0 %790
  %v792 = vrot.slane %v789, 4
  %v793 = vrot.slane %v791, 4
  %v794 = vsel %vm82, %v792, %v793
  %v795 = vsel %vm192, %v789, %v794
  %798 = vst [vmem:[#allocation2 + $0x54] sm:$0x33] %v795
  %799 = vst.msk [vmem:[#allocation2 + $0x5c] sm:$0x3] %vm45, %v791
  %800 = vrot.lane.b32.xlu0 %v632, 92
  %v801 = vpop.permute.xlu0 %800
  %802 = vrot.lane.b32.xlu0 %v639, 92
  %v803 = vpop.permute.xlu0 %802
  %v804 = vrot.slane %v801, 4
  %v805 = vrot.slane %v803, 4
  %v806 = vsel %vm82, %v804, %v805
  %v807 = vsel %vm217, %v801, %v806
  %810 = vst [vmem:[#allocation2 + $0x24] sm:$0x33] %v807
  %811 = vst.msk [vmem:[#allocation2 + $0x2c] sm:$0x3] %vm45, %v803
  %812 = vrot.lane.b32.xlu0 %v652, 92
  %v813 = vpop.permute.xlu0 %812
  %814 = vrot.lane.b32.xlu0 %v659, 92
  %v815 = vpop.permute.xlu0 %814
  %v816 = vrot.slane %v813, 4
  %v817 = vrot.slane %v815, 4
  %v818 = vsel %vm82, %v816, %v817
  %v819 = vsel %vm217, %v813, %v818
  %822 = vst [vmem:[#allocation2 + $0x54] sm:$0xcc] %v819
  %823 = vst.msk [vmem:[#allocation2 + $0x5c] sm:$0xc] %vm66, %v815
  %824 = vrot.lane.b32.xlu0 %v671, 91
  %v825 = vpop.permute.xlu0 %824
  %826 = vrot.lane.b32.xlu0 %v632, 91
  %v827 = vpop.permute.xlu0 %826
  %v828 = vrot.slane %v825, 4
  %v829 = vrot.slane %v827, 4
  %v830 = vsel %vm82, %v828, %v829
  %v831 = vsel %vm242, %v825, %v830
  %834 = vst [vmem:[#allocation2 + $0x24] sm:$0xcc] %v831
  %835 = vst.msk [vmem:[#allocation2 + $0x2c] sm:$0xc] %vm66, %v827
  %836 = vrot.lane.b32.xlu0 %v659, 91
  %v837 = vpop.permute.xlu0 %836
  %838 = vrot.lane.b32.xlu0 %v691, 91
  %v839 = vpop.permute.xlu0 %838
  %v840 = vrot.slane %v837, 4
  %v841 = vrot.slane %v839, 4
  %v842 = vsel %vm82, %v840, %v841
  %v843 = vsel %vm242, %v837, %v842
  %846 = vst [vmem:[#allocation2 + $0x60] sm:$0x33] %v843
  %847 = vst.msk [vmem:[#allocation2 + $0x68] sm:$0x3] %vm45, %v839
  %848 = vrot.lane.b32.xlu0 %v632, 90
  %v849 = vpop.permute.xlu0 %848
  %850 = vrot.lane.b32.xlu0 %v639, 90
  %v851 = vpop.permute.xlu0 %850
  %v852 = vrot.slane %v849, 4
  %v853 = vrot.slane %v851, 4
  %v854 = vsel %vm82, %v852, %v853
  %v855 = vsel %vm267, %v849, %v854
  %858 = vst [vmem:[#allocation2 + $0x30] sm:$0x33] %v855
  %859 = vst.msk [vmem:[#allocation2 + $0x38] sm:$0x3] %vm45, %v851
  %860 = vrot.lane.b32.xlu0 %v652, 90
  %v861 = vpop.permute.xlu0 %860
  %862 = vrot.lane.b32.xlu0 %v659, 90
  %v863 = vpop.permute.xlu0 %862
  %v864 = vrot.slane %v861, 4
  %v865 = vrot.slane %v863, 4
  %v866 = vsel %vm82, %v864, %v865
  %v867 = vsel %vm267, %v861, %v866
  %870 = vst [vmem:[#allocation2 + $0x60] sm:$0xcc] %v867
  %871 = vst.msk [vmem:[#allocation2 + $0x68] sm:$0xc] %vm66, %v863
  %v872 = vld [vmem:[%s2] sm:$0xf]
  %v873 = vld [vmem:[%s2 + $0x4] sm:$0x1]
  %v874 = vld [vmem:[#allocation2] sm:$0xff]
  %v875 = vld [vmem:[#allocation2 + $0x8] sm:$0xf]
  %v876 = vld [vmem:[#allocation2 + $0xc] sm:$0xff]
  %v877 = vld [vmem:[#allocation2 + $0x14] sm:$0xf]
  %v878 = vld [vmem:[#allocation2 + $0x18] sm:$0xff]
  %v879 = vld [vmem:[#allocation2 + $0x20] sm:$0xf]
  %v880 = vld [vmem:[#allocation2 + $0x24] sm:$0xff]
  %v881 = vld [vmem:[#allocation2 + $0x2c] sm:$0xf]
  %v882 = vld [vmem:[#allocation2 + $0x30] sm:$0xff]
  %v883 = vld [vmem:[#allocation2 + $0x38] sm:$0xf]
  %v884 = vld [vmem:[#allocation2 + $0x3c] sm:$0xff]
  %v885 = vld [vmem:[#allocation2 + $0x44] sm:$0xf]
  %v886 = vld [vmem:[#allocation2 + $0x48] sm:$0xff]
  %v887 = vld [vmem:[#allocation2 + $0x50] sm:$0xf]
  %v888 = vld [vmem:[#allocation2 + $0x54] sm:$0xff]
  %v889 = vld [vmem:[#allocation2 + $0x5c] sm:$0xf]
  %v890 = vld [vmem:[#allocation2 + $0x60] sm:$0xff]
  %v891 = vld [vmem:[#allocation2 + $0x68] sm:$0xf]
  %v894 = vunpack.c.l.b16 %v872
  %v895 = vunpack.c.l.b16 %v873
  %v896 = vpack.c.b16 %v895, %v894
  %v915 = vunpack.c.l.b16 %v874
  %v916 = vunpack.c.h.b16 %v874
  %v917 = vunpack.c.l.b16 %v875
  %v918 = vunpack.c.l.b16 %v876
  %v919 = vunpack.c.h.b16 %v876
  %v920 = vunpack.c.l.b16 %v877
  %v921 = vunpack.c.l.b16 %v878
  %v922 = vunpack.c.h.b16 %v878
  %v923 = vunpack.c.l.b16 %v879
  %v924 = vunpack.c.l.b16 %v880
  %v925 = vunpack.c.h.b16 %v880
  %v926 = vunpack.c.l.b16 %v881
  %v927 = vunpack.c.l.b16 %v882
  %v928 = vunpack.c.h.b16 %v882
  %v929 = vunpack.c.l.b16 %v883
  %v930 = vunpack.c.l.b16 %v884
  %v931 = vunpack.c.h.b16 %v884
  %v932 = vunpack.c.l.b16 %v885
  %v933 = vunpack.c.l.b16 %v886
  %v934 = vunpack.c.h.b16 %v886
  %v935 = vunpack.c.l.b16 %v887
  %v936 = vunpack.c.l.b16 %v888
  %v937 = vunpack.c.h.b16 %v888
  %v938 = vunpack.c.l.b16 %v889
  %v939 = vunpack.c.l.b16 %v890
  %v940 = vunpack.c.h.b16 %v890
  %v941 = vunpack.c.l.b16 %v891
  %v942 = vpack.c.b16 %v918, %v915
  %v943 = vpack.c.b16 %v919, %v916
  %v944 = vpack.c.b16 %v920, %v917
  %v945 = vpack.c.b16 %v924, %v921
  %v946 = vpack.c.b16 %v925, %v922
  %v947 = vpack.c.b16 %v926, %v923
  %v948 = vpack.c.b16 %v930, %v927
  %v949 = vpack.c.b16 %v931, %v928
  %v950 = vpack.c.b16 %v932, %v929
  %v951 = vpack.c.b16 %v936, %v933
  %v952 = vpack.c.b16 %v937, %v934
  %v953 = vpack.c.b16 %v938, %v935
  %v954 = vpack.c.b16 %v939, %v939
  %v955 = vpack.c.b16 %v940, %v940
  %v956 = vpack.c.b16 %v941, %v941
  %v970 = vsel %vm382, %v896, 0
  %v973 = vsel %vm386, %v954, 0
  %v976 = vsel %vm386, %v955, 0
  %v979 = vsel %vm386, %v956, 0
  %981 = vmatprep.subr.bf16.mxu0 %v943
  %982 = vmatpush1.bf16.msra.mxu0 %v942
  %983 = vmatprep.subr.bf16.mxu0 %v946
  %984 = vmatpush1.bf16.msra.mxu0 %v945
  %985 = vmatprep.subr.bf16.mxu0 %v949
  %986 = vmatpush1.bf16.msra.mxu0 %v948
  %987 = vmatprep.subr.bf16.mxu0 %v952
  %988 = vmatpush1.bf16.msra.mxu0 %v951
  %989 = vmatprep.subr.bf16.mxu0 %v976
  %990 = vmatpush1.bf16.msra.mxu0 %v973
  %991 = vmatprep.subr.bf16.mxu0 0
  %992 = vmatpush1.bf16.msra.mxu0 0
  %993 = vmatprep.subr.bf16.mxu0 0
  %994 = vmatpush1.bf16.msra.mxu0 0
  %995 = vmatprep.subr.bf16.mxu0 0
  %996 = vmatpush1.bf16.msra.mxu0 0
  %997 = vmatprep.subr.bf16.mxu0 0
  %998 = vmatpush1.bf16.msra.mxu0 0
  %999 = vmatprep.subr.bf16.mxu0 0
  %1000 = vmatpush1.bf16.msra.mxu0 0
  %1001 = vmatprep.subr.bf16.mxu0 0
  %1002 = vmatpush1.bf16.msra.mxu0 0
  %1003 = vmatprep.subr.bf16.mxu0 0
  %1004 = vmatpush1.bf16.msra.mxu0 0
  %1005 = vmatprep.subr.bf16.mxu0 0
  %1006 = vmatpush1.bf16.msra.mxu0 0
  %1007 = vmatprep.subr.bf16.mxu0 0
  %1008 = vmatpush1.bf16.msra.mxu0 0
  %1009 = vmatprep.subr.bf16.mxu0 0
  %1010 = vmatpush1.bf16.msra.mxu0 0
  %1011 = vmatprep.subr.bf16.mxu0 0
  %1012 = vmatpush1.bf16.msra.mxu0 0
  %1013 = vmatprep.mubr.bf16.mxu0 0
  %1014 = vmatmul.mubr.bf16.gmra.mrb[0].mxu0 %v970
  %v1015 = vpop.f32.mrb[0].mxu0
  %v1016 = vadd.f32 0.0, %v1015
  %v1017 = vpop.f32.mrb[0].mxu0
  %v1018 = vadd.f32 0.0, %v1017
  %v1019 = vpop.f32.mrb[0].mxu0
  %v1020 = vadd.f32 0.0, %v1019
  %v1021 = vpop.f32.mrb[0].mxu0
  %v1022 = vadd.f32 0.0, %v1021
  %1023 = vdwg.mxu0
  %1024 = vmatprep.subr.bf16.mxu0 0
  %1025 = vmatpush1.bf16.msra.mxu0 %v944
  %1026 = vmatprep.subr.bf16.mxu0 0
  %1027 = vmatpush1.bf16.msra.mxu0 %v947
  %1028 = vmatprep.subr.bf16.mxu0 0
  %1029 = vmatpush1.bf16.msra.mxu0 %v950
  %1030 = vmatprep.subr.bf16.mxu0 0
  %1031 = vmatpush1.bf16.msra.mxu0 %v953
  %1032 = vmatprep.subr.bf16.mxu0 0
  %1033 = vmatpush1.bf16.msra.mxu0 %v979
  %1034 = vmatprep.subr.bf16.mxu0 0
  %1035 = vmatpush1.bf16.msra.mxu0 0
  %1036 = vmatprep.subr.bf16.mxu0 0
  %1037 = vmatpush1.bf16.msra.mxu0 0
  %1038 = vmatprep.subr.bf16.mxu0 0
  %1039 = vmatpush1.bf16.msra.mxu0 0
  %1040 = vmatprep.subr.bf16.mxu0 0
  %1041 = vmatpush1.bf16.msra.mxu0 0
  %1042 = vmatprep.subr.bf16.mxu0 0
  %1043 = vmatpush1.bf16.msra.mxu0 0
  %1044 = vmatprep.subr.bf16.mxu0 0
  %1045 = vmatpush1.bf16.msra.mxu0 0
  %1046 = vmatprep.subr.bf16.mxu0 0
  %1047 = vmatpush1.bf16.msra.mxu0 0
  %1048 = vmatprep.subr.bf16.mxu0 0
  %1049 = vmatpush1.bf16.msra.mxu0 0
  %1050 = vmatprep.subr.bf16.mxu0 0
  %1051 = vmatpush1.bf16.msra.mxu0 0
  %1052 = vmatprep.subr.bf16.mxu0 0
  %1053 = vmatpush1.bf16.msra.mxu0 0
  %1054 = vmatprep.subr.bf16.mxu0 0
  %1055 = vmatpush1.bf16.msra.mxu0 0
  %1056 = vmatprep.mubr.bf16.mxu0 0
  %1057 = vmatmul.mubr.bf16.gmra.mrb[0].mxu0 %v970
  %v1058 = vpop.f32.mrb[0].mxu0
  %v1059 = vadd.f32 0.0, %v1058
  %v1060 = vpop.f32.mrb[0].mxu0
  %v1061 = vpop.f32.mrb[0].mxu0
  %v1062 = vadd.f32 0.0, %v1061
  %v1063 = vpop.f32.mrb[0].mxu0
  %1064 = vdwg.mxu0
  %vm1065 = vcmp.eq.f32.partialorder %v1020, 0.0
  %vm1066 = vcmp.eq.f32.partialorder %v1022, 0.0
  %vm1067 = vcmp.eq.f32.partialorder %v1062, 0.0
  %v1068 = vsel %vm1065, 1.0, %v1020
  %v1069 = vsel %vm1066, 1.0, %v1022
  %v1070 = vsel %vm1067, 1.0, %v1062
  %v1071 = vrcp.pop %v1068
  %v1072 = vmul.f32 1.0, %v1071
  %v1073 = vrcp.pop %v1069
  %v1074 = vmul.f32 1.0, %v1073
  %v1075 = vrcp.pop %v1070
  %v1076 = vmul.f32 1.0, %v1075
  %vm1077 = vmxor %vm1065, 1
  %vm1078 = vmxor %vm1066, 1
  %vm1079 = vmxor %vm1067, 1
  %vm1080 = vmand %vm1077, %vm509
  %vm1081 = vmand %vm1078, %vm510
  %vm1082 = vmand %vm1079, %vm511
  %v1083 = vlaneseq
  %v1084 = vshrl.u32 %v1083, 7
  %v1085 = vsub.s32 0, %v1084
  %v1086 = vrot.slane %v1072, %v1085
  %v1087 = vlaneseq
  %v1088 = vshrl.u32 %v1087, 7
  %v1089 = vsub.s32 0, %v1088
  %v1090 = vrot.slane %v1074, %v1089
  %v1091 = vlaneseq
  %v1092 = vshrl.u32 %v1091, 7
  %v1093 = vsub.s32 0, %v1092
  %v1094 = vrot.slane %v1076, %v1093
  %v1095 = vmul.f32 %v1016, %v1086
  %v1096 = vmul.f32 %v1018, %v1090
  %v1097 = vmul.f32 %v1059, %v1094
  %v1098 = vsel %vm1080, 1, 0
  %v1099 = vsel %vm1081, 1, 0
  %v1100 = vsel %vm1082, 1, 0
  %v1101 = vlaneseq
  %v1102 = vshrl.u32 %v1101, 7
  %v1103 = vsub.s32 0, %v1102
  %v1104 = vrot.slane %v1098, %v1103
  %v1105 = vlaneseq
  %v1106 = vshrl.u32 %v1105, 7
  %v1107 = vsub.s32 0, %v1106
  %v1108 = vrot.slane %v1099, %v1107
  %v1109 = vlaneseq
  %v1110 = vshrl.u32 %v1109, 7
  %v1111 = vsub.s32 0, %v1110
  %v1112 = vrot.slane %v1100, %v1111
  %vm1113 = vcmp.eq.s32.totalorder %v1104, 1
  %vm1114 = vcmp.eq.s32.totalorder %v1108, 1
  %vm1115 = vcmp.eq.s32.totalorder %v1112, 1
  %v1116 = vsel %vm1113, %v1095, 0.0
  %v1117 = vsel %vm1114, %v1096, 0.0
  %v1118 = vsel %vm1115, %v1097, 0.0
  %v1119 = vpack.c.bf16 %v1116, %v1116
  %v1120 = vpack.c.bf16 %v1117, %v1117
  %v1121 = vpack.c.bf16 %v1118, %v1118
  %v1125 = vunpack.c.l.b16 %v1119
  %v1126 = vunpack.c.l.b16 %v1120
  %v1127 = vunpack.c.l.b16 %v1121
  %v1128 = vpack.c.b16 %v1126, %v1125
  %v1129 = vpack.c.b16 %v1127, %v1127
  %s1132 = scalar_lea.vmem %s4, 12
  %1133 = vst [vmem:[%s1132] sm:$0xff] %v1128
  %1134 = vst.msk [vmem:[%s1132 + $0x8] sm:$0xf] %vm565, %v1129
  %v1135 = vcvt.s32.f32 %v1098
  %v1136 = vcvt.s32.f32 %v1099
  %v1137 = vcvt.s32.f32 %v1100
  %v1141 = vcombine.low %v1135, %v1136
  %v1143 = vunpack.c.l.s4 1966171168
  %v1144 = vunpack.c.0.s8 %v1143
  %v1145 = vlaneseq
  %v1146 = vshrl.u32 %v1145, 7
  %v1147 = vsub.s32 %v1144, %v1146
  %v1148 = vrot.slane %v1141, %v1147
  %v1150 = vunpack.c.l.s4 1966171168
  %v1151 = vunpack.c.0.s8 %v1150
  %v1152 = vlaneseq
  %v1153 = vshrl.u32 %v1152, 7
  %v1154 = vsub.s32 %v1151, %v1153
  %v1155 = vrot.slane %v1137, %v1154
  %v1156 = vcombine.low %v1148, %v1155
  %v1158 = vunpack.c.l.s4 1966171168
  %v1159 = vunpack.c.0.s8 %v1158
  %v1160 = vlaneseq
  %v1161 = vshrl.u32 %v1160, 7
  %v1162 = vsub.s32 %v1159, %v1161
  %v1163 = vrot.slane %v1156, %v1162
  %s1165 = scalar_lea.vmem %s5, 3
  %1166 = vst.msk [vmem:[%s1165] sm:$0x7] %vm600, %v1163
  %v1167 = vadd.f32 %v1116, %v1117
  %v1168 = vsel %vm603, %v1118, 0.0
  %v1169 = vadd.f32 %v1167, %v1168
  %1170 = vadd.xlane.f32.xlu0 %v1169
  %v1171 = vpop.xlane.xlu0 %1170
  %s1172 = scalar_lea.vmem %s6, 8
  %1173 = vst.msk [vmem:[%s1172] sm:$0xff] %vm608, %v1171
  %v1174 = vmul.f32 %v1116, %v1116
  %v1175 = vmul.f32 %v1117, %v1117
  %v1176 = vmul.f32 %v1118, %v1118
  %v1177 = vadd.f32 %v1174, %v1175
  %v1178 = vsel %vm603, %v1176, 0.0
  %v1179 = vadd.f32 %v1177, %v1178
  %1180 = vadd.xlane.f32.xlu0 %v1179
  %v1181 = vpop.xlane.xlu0 %1180
  %s1182 = scalar_lea.vmem %s7, 8
  %1183 = vst.msk [vmem:[%s1182] sm:$0xff] %vm608, %v1181
  // Predicated region
  $region18: #{pcb_activ_forward.2} parent=0 // pred_check
    _
  $region19: #{pcb_activ_forward.2} parent=0 // pred_check_branch
    %1185 = sbr.rel (0) target = $region21
  $region20: #{pcb_activ_forward.2} parent=0 // pred_region
    _
  $region21: #{pcb_activ_forward.2} parent=0 // pred_fallthru
    _
  // Predicated region
  $region22: #{pcb_activ_forward.2} parent=0 // pred_check
    _
  $region23: #{pcb_activ_forward.2} parent=0 // pred_check_branch
    %1187 = sbr.rel (0) target = $region25
  $region24: #{pcb_activ_forward.2} parent=0 // pred_region
    _
  $region25: #{pcb_activ_forward.2} parent=0 // pred_fallthru
    _
  // Predicated region
  $region26: #{pcb_activ_forward.2} parent=0 // pred_check
    _
  $region27: #{pcb_activ_forward.2} parent=0 // pred_check_branch
    %1189 = sbr.rel (0) target = $region29
  $region28: #{pcb_activ_forward.2} parent=0 // pred_region
    _
  $region29: #{pcb_activ_forward.2} parent=0 // pred_fallthru
    _
  // Predicated region
  $region30: #{pcb_activ_forward.2} parent=0 // pred_check
    _
  $region31: #{pcb_activ_forward.2} parent=0 // pred_check_branch
    %1191 = sbr.rel (0) target = $region33
  $region32: #{pcb_activ_forward.2} parent=0 // pred_region
    _
  $region33: #{pcb_activ_forward.2} parent=0 // pred_fallthru
    _
  // Predicated region
  $region34: #{pcb_activ_forward.2} parent=0 // pred_check
    _
  $region35: #{pcb_activ_forward.2} parent=0 // pred_check_branch
    %1193 = sbr.rel (0) target = $region37
  $region36: #{pcb_activ_forward.2} parent=0 // pred_region
    _
  $region37: #{pcb_activ_forward.2} parent=0 // pred_fallthru
    _
  // Predicated region
  $region38: #{pcb_activ_forward.2} parent=0 // pred_check
    _
  $region39: #{pcb_activ_forward.2} parent=0 // pred_check_branch
    %1195 = sbr.rel (0) target = $region41
  $region40: #{pcb_activ_forward.2} parent=0 // pred_region
    _
  $region41: #{pcb_activ_forward.2} parent=0 // pred_fallthru
    _
  // Predicated region
  $region42: #{pcb_activ_forward.2} parent=0 // pred_check
    _
  $region43: #{pcb_activ_forward.2} parent=0 // pred_check_branch
    %1197 = sbr.rel (0) target = $region45
  $region44: #{pcb_activ_forward.2} parent=0 // pred_region
    _
  $region45: #{pcb_activ_forward.2} parent=0 // pred_fallthru
    _
  // Predicated region
  $region46: #{pcb_activ_forward.2} parent=0 // pred_check
    _
  $region47: #{pcb_activ_forward.2} parent=0 // pred_check_branch
    %1199 = sbr.rel (0) target = $region49
  $region48: #{pcb_activ_forward.2} parent=0 // pred_region
    _
  $region49: #{pcb_activ_forward.2} parent=0 // pred_fallthru
    _

</llo_original>
